<compile_context>
chip_gen: v7x
topology: tpu7x:2x2x1
jax: 0.10.0
libtpu: 0.0.40
codegen_flags: <defaults>
</compile_context>

<pallas_src>
import functools

import jax
import jax.numpy as jnp
from jax import lax
from jax.experimental import pallas as pl
from jax.experimental.pallas import tpu as pltpu


def lstm_tagger_kernel(ids_ref, emb_ref, wih_ref, whh_ref, b_ref,
                       wtag_ref, btag_ref, out_ref, x_scr, hseq_ref):
    """Embedding gather + LSTM recurrence + tag projection + log_softmax in VMEM."""
    seq_len = out_ref.shape[0]
    H = whh_ref.shape[0]

    # 1) In-kernel embedding gather (static unroll; ids are SMEM scalars).
    for t in range(seq_len):
        x_scr[pl.ds(t, 1), :] = emb_ref[pl.ds(ids_ref[t], 1), :]

    # 2) Input projection + bias for ALL timesteps as one MXU matmul
    #    (removes one matmul + broadcast-add from the serial recurrence).
    xw = (jnp.dot(x_scr[...], wih_ref[...], preferred_element_type=jnp.float32)
          + b_ref[...])                               # (seq_len, 4H), gates i,f,o,g

    # 3) Hoist recurrent weights into vregs once (H x 4H fits trivially).
    whh = whh_ref[...]                                # (H, 4H)

    # 4) Statically unrolled recurrence (h0 = c0 = 0, matching init_hidden()).
    h = jnp.zeros((1, H), jnp.float32)
    c = jnp.zeros((1, H), jnp.float32)
    for t in range(seq_len):
        gates = xw[t:t + 1, :] + jnp.dot(h, whh, preferred_element_type=jnp.float32)
        sig = jax.nn.sigmoid(gates[:, :3 * H])        # i, f, o in one EUP span
        g_g = jnp.tanh(gates[:, 3 * H:])              # g
        i_g = sig[:, 0 * H:1 * H]
        f_g = sig[:, 1 * H:2 * H]
        o_g = sig[:, 2 * H:3 * H]
        c = f_g * c + i_g * g_g
        h = o_g * jnp.tanh(c)
        hseq_ref[pl.ds(t, 1), :] = h                  # lstm_out[t]

    # 5) hidden2tag: (seq_len, H) @ (H, T) + b, then log_softmax over tagset.
    hs = hseq_ref[...]
    tag_space = (jnp.dot(hs, wtag_ref[...], preferred_element_type=jnp.float32)
                 + btag_ref[...])                     # (seq_len, T)
    m = jnp.max(tag_space, axis=1, keepdims=True)
    z = tag_space - m
    lse = jnp.log(jnp.sum(jnp.exp(z), axis=1, keepdims=True))
    out_ref[...] = z - lse


def _permute_gates_ifog(x):
    """PyTorch gate order (i, f, g, o) along leading 4H axis -> (i, f, o, g)."""
    i, f, g, o = jnp.split(x, 4, axis=0)
    return jnp.concatenate([i, f, o, g], axis=0)


@functools.partial(jax.jit, static_argnames=())
def lstm_tagger_forward(sentence, params):
    """sentence: int32 (seq_len,) token ids. Returns (seq_len, tagset) log-probs."""
    emb_table, w_ih, w_hh, b_ih, b_hh, w_tag, b_tag = (
        params["emb"], params["w_ih"], params["w_hh"],
        params["b_ih"], params["b_hh"], params["w_tag"], params["b_tag"])

    seq_len = sentence.shape[0]
    E = emb_table.shape[1]
    H = w_hh.shape[1]
    T = w_tag.shape[0]

    # Glue (compiled once under jit): gate permutation to (i,f,o,g), transposes,
    # bias folding.  Kernel slicing MUST match this permutation.
    wih_t = _permute_gates_ifog(w_ih).T                       # (E, 4H)
    whh_t = _permute_gates_ifog(w_hh).T                       # (H, 4H)
    bias = _permute_gates_ifog(b_ih + b_hh).reshape(1, 4 * H)  # (1, 4H)
    wtag_t = w_tag.T                                          # (H, T)
    btag = b_tag.reshape(1, T)                                # (1, T)

    smem = pl.BlockSpec(memory_space=pltpu.MemorySpace.SMEM)
    vmem = pl.BlockSpec(memory_space=pltpu.MemorySpace.VMEM)
    return pl.pallas_call(
        lstm_tagger_kernel,
        out_shape=jax.ShapeDtypeStruct((seq_len, T), jnp.float32),
        in_specs=[smem, vmem, vmem, vmem, vmem, vmem, vmem],
        out_specs=vmem,
        scratch_shapes=[pltpu.VMEM((seq_len, E), jnp.float32),   # gathered embeds
                        pltpu.VMEM((seq_len, H), jnp.float32)],  # lstm_out rows
    )(sentence.astype(jnp.int32), emb_table, wih_t, whh_t, bias, wtag_t, btag)


def reference_forward(sentence, params):
    """Pure-JAX reference (mirrors torch.nn.LSTM semantics, batch=1)."""
    emb_table, w_ih, w_hh, b_ih, b_hh, w_tag, b_tag = (
        params["emb"], params["w_ih"], params["w_hh"],
        params["b_ih"], params["b_hh"], params["w_tag"], params["b_tag"])
    H = w_hh.shape[1]
    embeds = emb_table[sentence]

    def step(carry, x):
        h, c = carry
        gates = x @ w_ih.T + h @ w_hh.T + b_ih + b_hh
        i, f, g, o = jnp.split(gates, 4)
        i, f, o = jax.nn.sigmoid(i), jax.nn.sigmoid(f), jax.nn.sigmoid(o)
        g = jnp.tanh(g)
        c_new = f * c + i * g
        h_new = o * jnp.tanh(c_new)
        return (h_new, c_new), h_new

    h0 = jnp.zeros((H,), jnp.float32)
    (_, _), hs = lax.scan(step, (h0, h0), embeds)
    tag_space = hs @ w_tag.T + b_tag
    return jax.nn.log_softmax(tag_space, axis=1)


def init_params(key, vocab_size, embedding_dim, hidden_dim, tagset_size):
    """Deterministic synthetic parameters matching nn.Embedding/nn.LSTM/nn.Linear shapes."""
    ks = jax.random.split(key, 7)
    s_lstm = 1.0 / jnp.sqrt(hidden_dim)
    s_lin = 1.0 / jnp.sqrt(hidden_dim)
    return {
        "emb":   jax.random.normal(ks[0], (vocab_size, embedding_dim), jnp.float32),
        "w_ih":  jax.random.uniform(ks[1], (4 * hidden_dim, embedding_dim), jnp.float32, -s_lstm, s_lstm),
        "w_hh":  jax.random.uniform(ks[2], (4 * hidden_dim, hidden_dim), jnp.float32, -s_lstm, s_lstm),
        "b_ih":  jax.random.uniform(ks[3], (4 * hidden_dim,), jnp.float32, -s_lstm, s_lstm),
        "b_hh":  jax.random.uniform(ks[4], (4 * hidden_dim,), jnp.float32, -s_lstm, s_lstm),
        "w_tag": jax.random.uniform(ks[5], (tagset_size, hidden_dim), jnp.float32, -s_lin, s_lin),
        "b_tag": jax.random.uniform(ks[6], (tagset_size,), jnp.float32, -s_lin, s_lin),
    }


if __name__ == "__main__":
    vocab_size, embedding_dim, hidden_dim, tagset_size = 20, 32, 32, 8
    seq_len = 8

    key = jax.random.PRNGKey(0)
    pkey, skey = jax.random.split(key)
    params = init_params(pkey, vocab_size, embedding_dim, hidden_dim, tagset_size)
    sentence = jax.random.randint(skey, (seq_len,), 0, vocab_size, dtype=jnp.int32)

    tag_scores = lstm_tagger_forward(sentence, params)
    tag_scores = jax.block_until_ready(tag_scores)

    ref = reference_forward(sentence, params)
    assert tag_scores.shape == (seq_len, tagset_size)
    assert jnp.allclose(tag_scores, ref, atol=1e-5, rtol=1e-5)

    print("KERNEL_OK")
</pallas_src>

<mosaic_0001>
module attributes {stable_mosaic.version = 11 : i64} {
  func.func @lstm_tagger_kernel(%arg0: memref<8xi32, #tpu.memory_space<smem>>, %arg1: memref<20x32xf32, #tpu.memory_space<vmem>>, %arg2: memref<32x128xf32, #tpu.memory_space<vmem>>, %arg3: memref<32x128xf32, #tpu.memory_space<vmem>>, %arg4: memref<1x128xf32, #tpu.memory_space<vmem>>, %arg5: memref<32x8xf32, #tpu.memory_space<vmem>>, %arg6: memref<1x8xf32, #tpu.memory_space<vmem>>, %arg7: memref<8x8xf32, #tpu.memory_space<vmem>>, %arg8: memref<8x32xf32, #tpu.memory_space<vmem>>, %arg9: memref<8x32xf32, #tpu.memory_space<vmem>>) attributes {dimension_semantics = [], scalar_prefetch = 0 : i64, scratch_operands = 2 : i64, tpu.core_type = #tpu.core_type<tc>} {
    %c0 = arith.constant 0 : index
    %0 = memref.load %arg0[%c0] : memref<8xi32, #tpu.memory_space<smem>>
    %1 = arith.index_cast %0 : i32 to index
    %c0_0 = arith.constant 0 : index
    %2 = vector.load %arg1[%1, %c0_0] : memref<20x32xf32, #tpu.memory_space<vmem>>, vector<1x32xf32>
    %c0_1 = arith.constant 0 : index
    %c0_2 = arith.constant 0 : index
    %3 = vector.load %arg8[%c0_1, %c0_2] : memref<8x32xf32, #tpu.memory_space<vmem>>, vector<1x32xf32>
    tpu.vector_store %arg8[%c0_1, %c0_2], %2 {strides = array<i32>} : memref<8x32xf32, #tpu.memory_space<vmem>>, vector<1x32xf32>,
    %c1 = arith.constant 1 : index
    %4 = memref.load %arg0[%c1] : memref<8xi32, #tpu.memory_space<smem>>
    %5 = arith.index_cast %4 : i32 to index
    %c0_3 = arith.constant 0 : index
    %6 = vector.load %arg1[%5, %c0_3] : memref<20x32xf32, #tpu.memory_space<vmem>>, vector<1x32xf32>
    %c1_4 = arith.constant 1 : index
    %c0_5 = arith.constant 0 : index
    %7 = vector.load %arg8[%c1_4, %c0_5] : memref<8x32xf32, #tpu.memory_space<vmem>>, vector<1x32xf32>
    tpu.vector_store %arg8[%c1_4, %c0_5], %6 {strides = array<i32>} : memref<8x32xf32, #tpu.memory_space<vmem>>, vector<1x32xf32>,
    %c2 = arith.constant 2 : index
    %8 = memref.load %arg0[%c2] : memref<8xi32, #tpu.memory_space<smem>>
    %9 = arith.index_cast %8 : i32 to index
    %c0_6 = arith.constant 0 : index
    %10 = vector.load %arg1[%9, %c0_6] : memref<20x32xf32, #tpu.memory_space<vmem>>, vector<1x32xf32>
    %c2_7 = arith.constant 2 : index
    %c0_8 = arith.constant 0 : index
    %11 = vector.load %arg8[%c2_7, %c0_8] : memref<8x32xf32, #tpu.memory_space<vmem>>, vector<1x32xf32>
    tpu.vector_store %arg8[%c2_7, %c0_8], %10 {strides = array<i32>} : memref<8x32xf32, #tpu.memory_space<vmem>>, vector<1x32xf32>,
    %c3 = arith.constant 3 : index
    %12 = memref.load %arg0[%c3] : memref<8xi32, #tpu.memory_space<smem>>
    %13 = arith.index_cast %12 : i32 to index
    %c0_9 = arith.constant 0 : index
    %14 = vector.load %arg1[%13, %c0_9] : memref<20x32xf32, #tpu.memory_space<vmem>>, vector<1x32xf32>
    %c3_10 = arith.constant 3 : index
    %c0_11 = arith.constant 0 : index
    %15 = vector.load %arg8[%c3_10, %c0_11] : memref<8x32xf32, #tpu.memory_space<vmem>>, vector<1x32xf32>
    tpu.vector_store %arg8[%c3_10, %c0_11], %14 {strides = array<i32>} : memref<8x32xf32, #tpu.memory_space<vmem>>, vector<1x32xf32>,
    %c4 = arith.constant 4 : index
    %16 = memref.load %arg0[%c4] : memref<8xi32, #tpu.memory_space<smem>>
    %17 = arith.index_cast %16 : i32 to index
    %c0_12 = arith.constant 0 : index
    %18 = vector.load %arg1[%17, %c0_12] : memref<20x32xf32, #tpu.memory_space<vmem>>, vector<1x32xf32>
    %c4_13 = arith.constant 4 : index
    %c0_14 = arith.constant 0 : index
    %19 = vector.load %arg8[%c4_13, %c0_14] : memref<8x32xf32, #tpu.memory_space<vmem>>, vector<1x32xf32>
    tpu.vector_store %arg8[%c4_13, %c0_14], %18 {strides = array<i32>} : memref<8x32xf32, #tpu.memory_space<vmem>>, vector<1x32xf32>,
    %c5 = arith.constant 5 : index
    %20 = memref.load %arg0[%c5] : memref<8xi32, #tpu.memory_space<smem>>
    %21 = arith.index_cast %20 : i32 to index
    %c0_15 = arith.constant 0 : index
    %22 = vector.load %arg1[%21, %c0_15] : memref<20x32xf32, #tpu.memory_space<vmem>>, vector<1x32xf32>
    %c5_16 = arith.constant 5 : index
    %c0_17 = arith.constant 0 : index
    %23 = vector.load %arg8[%c5_16, %c0_17] : memref<8x32xf32, #tpu.memory_space<vmem>>, vector<1x32xf32>
    tpu.vector_store %arg8[%c5_16, %c0_17], %22 {strides = array<i32>} : memref<8x32xf32, #tpu.memory_space<vmem>>, vector<1x32xf32>,
    %c6 = arith.constant 6 : index
    %24 = memref.load %arg0[%c6] : memref<8xi32, #tpu.memory_space<smem>>
    %25 = arith.index_cast %24 : i32 to index
    %c0_18 = arith.constant 0 : index
    %26 = vector.load %arg1[%25, %c0_18] : memref<20x32xf32, #tpu.memory_space<vmem>>, vector<1x32xf32>
    %c6_19 = arith.constant 6 : index
    %c0_20 = arith.constant 0 : index
    %27 = vector.load %arg8[%c6_19, %c0_20] : memref<8x32xf32, #tpu.memory_space<vmem>>, vector<1x32xf32>
    tpu.vector_store %arg8[%c6_19, %c0_20], %26 {strides = array<i32>} : memref<8x32xf32, #tpu.memory_space<vmem>>, vector<1x32xf32>,
    %c7 = arith.constant 7 : index
    %28 = memref.load %arg0[%c7] : memref<8xi32, #tpu.memory_space<smem>>
    %29 = arith.index_cast %28 : i32 to index
    %c0_21 = arith.constant 0 : index
    %30 = vector.load %arg1[%29, %c0_21] : memref<20x32xf32, #tpu.memory_space<vmem>>, vector<1x32xf32>
    %c7_22 = arith.constant 7 : index
    %c0_23 = arith.constant 0 : index
    %31 = vector.load %arg8[%c7_22, %c0_23] : memref<8x32xf32, #tpu.memory_space<vmem>>, vector<1x32xf32>
    tpu.vector_store %arg8[%c7_22, %c0_23], %30 {strides = array<i32>} : memref<8x32xf32, #tpu.memory_space<vmem>>, vector<1x32xf32>,
    %c0_24 = arith.constant 0 : index
    %c0_25 = arith.constant 0 : index
    %32 = vector.load %arg8[%c0_24, %c0_25] : memref<8x32xf32, #tpu.memory_space<vmem>>, vector<8x32xf32>
    %c0_26 = arith.constant 0 : index
    %c0_27 = arith.constant 0 : index
    %33 = vector.load %arg2[%c0_26, %c0_27] : memref<32x128xf32, #tpu.memory_space<vmem>>, vector<32x128xf32>
    %cst = arith.constant dense<0.000000e+00> : vector<8x128xf32>
    %34 = tpu.matmul %32, %33, %cst {dimension_numbers = #tpu.dot_dimension_numbers<[1], [0], [0], [1], [0, 0, 1, 1], [], []>} : vector<8x32xf32>, vector<32x128xf32>, vector<8x128xf32> -> vector<8x128xf32>
    %c0_28 = arith.constant 0 : index
    %c0_29 = arith.constant 0 : index
    %35 = vector.load %arg4[%c0_28, %c0_29] : memref<1x128xf32, #tpu.memory_space<vmem>>, vector<1x128xf32>
    %36 = vector.broadcast %35 : vector<1x128xf32> to vector<8x128xf32>
    %37 = arith.addf %34, %36 : vector<8x128xf32>
    %c0_30 = arith.constant 0 : index
    %c0_31 = arith.constant 0 : index
    %38 = vector.load %arg3[%c0_30, %c0_31] : memref<32x128xf32, #tpu.memory_space<vmem>>, vector<32x128xf32>
    %cst_32 = arith.constant 0.000000e+00 : f32
    %39 = vector.broadcast %cst_32 : f32 to vector<1x32xf32>
    %cst_33 = arith.constant 0.000000e+00 : f32
    %40 = vector.broadcast %cst_33 : f32 to vector<1x32xf32>
    %41 = vector.extract_strided_slice %37 {offsets = [0, 0], sizes = [1, 128], strides = [1, 1]} : vector<8x128xf32> to vector<1x128xf32>
    %cst_34 = arith.constant dense<0.000000e+00> : vector<1x128xf32>
    %42 = tpu.matmul %39, %38, %cst_34 {dimension_numbers = #tpu.dot_dimension_numbers<[1], [0], [0], [1], [0, 0, 1, 1], [], []>} : vector<1x32xf32>, vector<32x128xf32>, vector<1x128xf32> -> vector<1x128xf32>
    %43 = arith.addf %41, %42 : vector<1x128xf32>
    %44 = vector.extract_strided_slice %43 {offsets = [0, 0], sizes = [1, 96], strides = [1, 1]} : vector<1x128xf32> to vector<1x96xf32>
    %45 = arith.negf %44 : vector<1x96xf32>
    %46 = math.exp %45 : vector<1x96xf32>
    %cst_35 = arith.constant 1.000000e+00 : f32
    %47 = vector.broadcast %cst_35 : f32 to vector<1x96xf32>
    %48 = arith.addf %47, %46 : vector<1x96xf32>
    %49 = arith.divf %47, %48 : vector<1x96xf32>
    %50 = vector.extract_strided_slice %43 {offsets = [0, 96], sizes = [1, 32], strides = [1, 1]} : vector<1x128xf32> to vector<1x32xf32>
    %51 = math.tanh %50 : vector<1x32xf32>
    %52 = vector.extract_strided_slice %49 {offsets = [0, 0], sizes = [1, 32], strides = [1, 1]} : vector<1x96xf32> to vector<1x32xf32>
    %53 = vector.extract_strided_slice %49 {offsets = [0, 32], sizes = [1, 32], strides = [1, 1]} : vector<1x96xf32> to vector<1x32xf32>
    %54 = vector.extract_strided_slice %49 {offsets = [0, 64], sizes = [1, 32], strides = [1, 1]} : vector<1x96xf32> to vector<1x32xf32>
    %55 = arith.mulf %53, %40 : vector<1x32xf32>
    %56 = arith.mulf %52, %51 : vector<1x32xf32>
    %57 = arith.addf %55, %56 : vector<1x32xf32>
    %58 = math.tanh %57 : vector<1x32xf32>
    %59 = arith.mulf %54, %58 : vector<1x32xf32>
    %c0_36 = arith.constant 0 : index
    %c0_37 = arith.constant 0 : index
    %60 = vector.load %arg9[%c0_36, %c0_37] : memref<8x32xf32, #tpu.memory_space<vmem>>, vector<1x32xf32>
    tpu.vector_store %arg9[%c0_36, %c0_37], %59 {strides = array<i32>} : memref<8x32xf32, #tpu.memory_space<vmem>>, vector<1x32xf32>,
    %61 = vector.extract_strided_slice %37 {offsets = [1, 0], sizes = [1, 128], strides = [1, 1]} : vector<8x128xf32> to vector<1x128xf32>
    %cst_38 = arith.constant dense<0.000000e+00> : vector<1x128xf32>
    %62 = tpu.matmul %59, %38, %cst_38 {dimension_numbers = #tpu.dot_dimension_numbers<[1], [0], [0], [1], [0, 0, 1, 1], [], []>} : vector<1x32xf32>, vector<32x128xf32>, vector<1x128xf32> -> vector<1x128xf32>
    %63 = arith.addf %61, %62 : vector<1x128xf32>
    %64 = vector.extract_strided_slice %63 {offsets = [0, 0], sizes = [1, 96], strides = [1, 1]} : vector<1x128xf32> to vector<1x96xf32>
    %65 = arith.negf %64 : vector<1x96xf32>
    %66 = math.exp %65 : vector<1x96xf32>
    %cst_39 = arith.constant 1.000000e+00 : f32
    %67 = vector.broadcast %cst_39 : f32 to vector<1x96xf32>
    %68 = arith.addf %67, %66 : vector<1x96xf32>
    %69 = arith.divf %67, %68 : vector<1x96xf32>
    %70 = vector.extract_strided_slice %63 {offsets = [0, 96], sizes = [1, 32], strides = [1, 1]} : vector<1x128xf32> to vector<1x32xf32>
    %71 = math.tanh %70 : vector<1x32xf32>
    %72 = vector.extract_strided_slice %69 {offsets = [0, 0], sizes = [1, 32], strides = [1, 1]} : vector<1x96xf32> to vector<1x32xf32>
    %73 = vector.extract_strided_slice %69 {offsets = [0, 32], sizes = [1, 32], strides = [1, 1]} : vector<1x96xf32> to vector<1x32xf32>
    %74 = vector.extract_strided_slice %69 {offsets = [0, 64], sizes = [1, 32], strides = [1, 1]} : vector<1x96xf32> to vector<1x32xf32>
    %75 = arith.mulf %73, %57 : vector<1x32xf32>
    %76 = arith.mulf %72, %71 : vector<1x32xf32>
    %77 = arith.addf %75, %76 : vector<1x32xf32>
    %78 = math.tanh %77 : vector<1x32xf32>
    %79 = arith.mulf %74, %78 : vector<1x32xf32>
    %c1_40 = arith.constant 1 : index
    %c0_41 = arith.constant 0 : index
    %80 = vector.load %arg9[%c1_40, %c0_41] : memref<8x32xf32, #tpu.memory_space<vmem>>, vector<1x32xf32>
    tpu.vector_store %arg9[%c1_40, %c0_41], %79 {strides = array<i32>} : memref<8x32xf32, #tpu.memory_space<vmem>>, vector<1x32xf32>,
    %81 = vector.extract_strided_slice %37 {offsets = [2, 0], sizes = [1, 128], strides = [1, 1]} : vector<8x128xf32> to vector<1x128xf32>
    %cst_42 = arith.constant dense<0.000000e+00> : vector<1x128xf32>
    %82 = tpu.matmul %79, %38, %cst_42 {dimension_numbers = #tpu.dot_dimension_numbers<[1], [0], [0], [1], [0, 0, 1, 1], [], []>} : vector<1x32xf32>, vector<32x128xf32>, vector<1x128xf32> -> vector<1x128xf32>
    %83 = arith.addf %81, %82 : vector<1x128xf32>
    %84 = vector.extract_strided_slice %83 {offsets = [0, 0], sizes = [1, 96], strides = [1, 1]} : vector<1x128xf32> to vector<1x96xf32>
    %85 = arith.negf %84 : vector<1x96xf32>
    %86 = math.exp %85 : vector<1x96xf32>
    %cst_43 = arith.constant 1.000000e+00 : f32
    %87 = vector.broadcast %cst_43 : f32 to vector<1x96xf32>
    %88 = arith.addf %87, %86 : vector<1x96xf32>
    %89 = arith.divf %87, %88 : vector<1x96xf32>
    %90 = vector.extract_strided_slice %83 {offsets = [0, 96], sizes = [1, 32], strides = [1, 1]} : vector<1x128xf32> to vector<1x32xf32>
    %91 = math.tanh %90 : vector<1x32xf32>
    %92 = vector.extract_strided_slice %89 {offsets = [0, 0], sizes = [1, 32], strides = [1, 1]} : vector<1x96xf32> to vector<1x32xf32>
    %93 = vector.extract_strided_slice %89 {offsets = [0, 32], sizes = [1, 32], strides = [1, 1]} : vector<1x96xf32> to vector<1x32xf32>
    %94 = vector.extract_strided_slice %89 {offsets = [0, 64], sizes = [1, 32], strides = [1, 1]} : vector<1x96xf32> to vector<1x32xf32>
    %95 = arith.mulf %93, %77 : vector<1x32xf32>
    %96 = arith.mulf %92, %91 : vector<1x32xf32>
    %97 = arith.addf %95, %96 : vector<1x32xf32>
    %98 = math.tanh %97 : vector<1x32xf32>
    %99 = arith.mulf %94, %98 : vector<1x32xf32>
    %c2_44 = arith.constant 2 : index
    %c0_45 = arith.constant 0 : index
    %100 = vector.load %arg9[%c2_44, %c0_45] : memref<8x32xf32, #tpu.memory_space<vmem>>, vector<1x32xf32>
    tpu.vector_store %arg9[%c2_44, %c0_45], %99 {strides = array<i32>} : memref<8x32xf32, #tpu.memory_space<vmem>>, vector<1x32xf32>,
    %101 = vector.extract_strided_slice %37 {offsets = [3, 0], sizes = [1, 128], strides = [1, 1]} : vector<8x128xf32> to vector<1x128xf32>
    %cst_46 = arith.constant dense<0.000000e+00> : vector<1x128xf32>
    %102 = tpu.matmul %99, %38, %cst_46 {dimension_numbers = #tpu.dot_dimension_numbers<[1], [0], [0], [1], [0, 0, 1, 1], [], []>} : vector<1x32xf32>, vector<32x128xf32>, vector<1x128xf32> -> vector<1x128xf32>
    %103 = arith.addf %101, %102 : vector<1x128xf32>
    %104 = vector.extract_strided_slice %103 {offsets = [0, 0], sizes = [1, 96], strides = [1, 1]} : vector<1x128xf32> to vector<1x96xf32>
    %105 = arith.negf %104 : vector<1x96xf32>
    %106 = math.exp %105 : vector<1x96xf32>
    %cst_47 = arith.constant 1.000000e+00 : f32
    %107 = vector.broadcast %cst_47 : f32 to vector<1x96xf32>
    %108 = arith.addf %107, %106 : vector<1x96xf32>
    %109 = arith.divf %107, %108 : vector<1x96xf32>
    %110 = vector.extract_strided_slice %103 {offsets = [0, 96], sizes = [1, 32], strides = [1, 1]} : vector<1x128xf32> to vector<1x32xf32>
    %111 = math.tanh %110 : vector<1x32xf32>
    %112 = vector.extract_strided_slice %109 {offsets = [0, 0], sizes = [1, 32], strides = [1, 1]} : vector<1x96xf32> to vector<1x32xf32>
    %113 = vector.extract_strided_slice %109 {offsets = [0, 32], sizes = [1, 32], strides = [1, 1]} : vector<1x96xf32> to vector<1x32xf32>
    %114 = vector.extract_strided_slice %109 {offsets = [0, 64], sizes = [1, 32], strides = [1, 1]} : vector<1x96xf32> to vector<1x32xf32>
    %115 = arith.mulf %113, %97 : vector<1x32xf32>
    %116 = arith.mulf %112, %111 : vector<1x32xf32>
    %117 = arith.addf %115, %116 : vector<1x32xf32>
    %118 = math.tanh %117 : vector<1x32xf32>
    %119 = arith.mulf %114, %118 : vector<1x32xf32>
    %c3_48 = arith.constant 3 : index
    %c0_49 = arith.constant 0 : index
    %120 = vector.load %arg9[%c3_48, %c0_49] : memref<8x32xf32, #tpu.memory_space<vmem>>, vector<1x32xf32>
    tpu.vector_store %arg9[%c3_48, %c0_49], %119 {strides = array<i32>} : memref<8x32xf32, #tpu.memory_space<vmem>>, vector<1x32xf32>,
    %121 = vector.extract_strided_slice %37 {offsets = [4, 0], sizes = [1, 128], strides = [1, 1]} : vector<8x128xf32> to vector<1x128xf32>
    %cst_50 = arith.constant dense<0.000000e+00> : vector<1x128xf32>
    %122 = tpu.matmul %119, %38, %cst_50 {dimension_numbers = #tpu.dot_dimension_numbers<[1], [0], [0], [1], [0, 0, 1, 1], [], []>} : vector<1x32xf32>, vector<32x128xf32>, vector<1x128xf32> -> vector<1x128xf32>
    %123 = arith.addf %121, %122 : vector<1x128xf32>
    %124 = vector.extract_strided_slice %123 {offsets = [0, 0], sizes = [1, 96], strides = [1, 1]} : vector<1x128xf32> to vector<1x96xf32>
    %125 = arith.negf %124 : vector<1x96xf32>
    %126 = math.exp %125 : vector<1x96xf32>
    %cst_51 = arith.constant 1.000000e+00 : f32
    %127 = vector.broadcast %cst_51 : f32 to vector<1x96xf32>
    %128 = arith.addf %127, %126 : vector<1x96xf32>
    %129 = arith.divf %127, %128 : vector<1x96xf32>
    %130 = vector.extract_strided_slice %123 {offsets = [0, 96], sizes = [1, 32], strides = [1, 1]} : vector<1x128xf32> to vector<1x32xf32>
    %131 = math.tanh %130 : vector<1x32xf32>
    %132 = vector.extract_strided_slice %129 {offsets = [0, 0], sizes = [1, 32], strides = [1, 1]} : vector<1x96xf32> to vector<1x32xf32>
    %133 = vector.extract_strided_slice %129 {offsets = [0, 32], sizes = [1, 32], strides = [1, 1]} : vector<1x96xf32> to vector<1x32xf32>
    %134 = vector.extract_strided_slice %129 {offsets = [0, 64], sizes = [1, 32], strides = [1, 1]} : vector<1x96xf32> to vector<1x32xf32>
    %135 = arith.mulf %133, %117 : vector<1x32xf32>
    %136 = arith.mulf %132, %131 : vector<1x32xf32>
    %137 = arith.addf %135, %136 : vector<1x32xf32>
    %138 = math.tanh %137 : vector<1x32xf32>
    %139 = arith.mulf %134, %138 : vector<1x32xf32>
    %c4_52 = arith.constant 4 : index
    %c0_53 = arith.constant 0 : index
    %140 = vector.load %arg9[%c4_52, %c0_53] : memref<8x32xf32, #tpu.memory_space<vmem>>, vector<1x32xf32>
    tpu.vector_store %arg9[%c4_52, %c0_53], %139 {strides = array<i32>} : memref<8x32xf32, #tpu.memory_space<vmem>>, vector<1x32xf32>,
    %141 = vector.extract_strided_slice %37 {offsets = [5, 0], sizes = [1, 128], strides = [1, 1]} : vector<8x128xf32> to vector<1x128xf32>
    %cst_54 = arith.constant dense<0.000000e+00> : vector<1x128xf32>
    %142 = tpu.matmul %139, %38, %cst_54 {dimension_numbers = #tpu.dot_dimension_numbers<[1], [0], [0], [1], [0, 0, 1, 1], [], []>} : vector<1x32xf32>, vector<32x128xf32>, vector<1x128xf32> -> vector<1x128xf32>
    %143 = arith.addf %141, %142 : vector<1x128xf32>
    %144 = vector.extract_strided_slice %143 {offsets = [0, 0], sizes = [1, 96], strides = [1, 1]} : vector<1x128xf32> to vector<1x96xf32>
    %145 = arith.negf %144 : vector<1x96xf32>
    %146 = math.exp %145 : vector<1x96xf32>
    %cst_55 = arith.constant 1.000000e+00 : f32
    %147 = vector.broadcast %cst_55 : f32 to vector<1x96xf32>
    %148 = arith.addf %147, %146 : vector<1x96xf32>
    %149 = arith.divf %147, %148 : vector<1x96xf32>
    %150 = vector.extract_strided_slice %143 {offsets = [0, 96], sizes = [1, 32], strides = [1, 1]} : vector<1x128xf32> to vector<1x32xf32>
    %151 = math.tanh %150 : vector<1x32xf32>
    %152 = vector.extract_strided_slice %149 {offsets = [0, 0], sizes = [1, 32], strides = [1, 1]} : vector<1x96xf32> to vector<1x32xf32>
    %153 = vector.extract_strided_slice %149 {offsets = [0, 32], sizes = [1, 32], strides = [1, 1]} : vector<1x96xf32> to vector<1x32xf32>
    %154 = vector.extract_strided_slice %149 {offsets = [0, 64], sizes = [1, 32], strides = [1, 1]} : vector<1x96xf32> to vector<1x32xf32>
    %155 = arith.mulf %153, %137 : vector<1x32xf32>
    %156 = arith.mulf %152, %151 : vector<1x32xf32>
    %157 = arith.addf %155, %156 : vector<1x32xf32>
    %158 = math.tanh %157 : vector<1x32xf32>
    %159 = arith.mulf %154, %158 : vector<1x32xf32>
    %c5_56 = arith.constant 5 : index
    %c0_57 = arith.constant 0 : index
    %160 = vector.load %arg9[%c5_56, %c0_57] : memref<8x32xf32, #tpu.memory_space<vmem>>, vector<1x32xf32>
    tpu.vector_store %arg9[%c5_56, %c0_57], %159 {strides = array<i32>} : memref<8x32xf32, #tpu.memory_space<vmem>>, vector<1x32xf32>,
    %161 = vector.extract_strided_slice %37 {offsets = [6, 0], sizes = [1, 128], strides = [1, 1]} : vector<8x128xf32> to vector<1x128xf32>
    %cst_58 = arith.constant dense<0.000000e+00> : vector<1x128xf32>
    %162 = tpu.matmul %159, %38, %cst_58 {dimension_numbers = #tpu.dot_dimension_numbers<[1], [0], [0], [1], [0, 0, 1, 1], [], []>} : vector<1x32xf32>, vector<32x128xf32>, vector<1x128xf32> -> vector<1x128xf32>
    %163 = arith.addf %161, %162 : vector<1x128xf32>
    %164 = vector.extract_strided_slice %163 {offsets = [0, 0], sizes = [1, 96], strides = [1, 1]} : vector<1x128xf32> to vector<1x96xf32>
    %165 = arith.negf %164 : vector<1x96xf32>
    %166 = math.exp %165 : vector<1x96xf32>
    %cst_59 = arith.constant 1.000000e+00 : f32
    %167 = vector.broadcast %cst_59 : f32 to vector<1x96xf32>
    %168 = arith.addf %167, %166 : vector<1x96xf32>
    %169 = arith.divf %167, %168 : vector<1x96xf32>
    %170 = vector.extract_strided_slice %163 {offsets = [0, 96], sizes = [1, 32], strides = [1, 1]} : vector<1x128xf32> to vector<1x32xf32>
    %171 = math.tanh %170 : vector<1x32xf32>
    %172 = vector.extract_strided_slice %169 {offsets = [0, 0], sizes = [1, 32], strides = [1, 1]} : vector<1x96xf32> to vector<1x32xf32>
    %173 = vector.extract_strided_slice %169 {offsets = [0, 32], sizes = [1, 32], strides = [1, 1]} : vector<1x96xf32> to vector<1x32xf32>
    %174 = vector.extract_strided_slice %169 {offsets = [0, 64], sizes = [1, 32], strides = [1, 1]} : vector<1x96xf32> to vector<1x32xf32>
    %175 = arith.mulf %173, %157 : vector<1x32xf32>
    %176 = arith.mulf %172, %171 : vector<1x32xf32>
    %177 = arith.addf %175, %176 : vector<1x32xf32>
    %178 = math.tanh %177 : vector<1x32xf32>
    %179 = arith.mulf %174, %178 : vector<1x32xf32>
    %c6_60 = arith.constant 6 : index
    %c0_61 = arith.constant 0 : index
    %180 = vector.load %arg9[%c6_60, %c0_61] : memref<8x32xf32, #tpu.memory_space<vmem>>, vector<1x32xf32>
    tpu.vector_store %arg9[%c6_60, %c0_61], %179 {strides = array<i32>} : memref<8x32xf32, #tpu.memory_space<vmem>>, vector<1x32xf32>,
    %181 = vector.extract_strided_slice %37 {offsets = [7, 0], sizes = [1, 128], strides = [1, 1]} : vector<8x128xf32> to vector<1x128xf32>
    %cst_62 = arith.constant dense<0.000000e+00> : vector<1x128xf32>
    %182 = tpu.matmul %179, %38, %cst_62 {dimension_numbers = #tpu.dot_dimension_numbers<[1], [0], [0], [1], [0, 0, 1, 1], [], []>} : vector<1x32xf32>, vector<32x128xf32>, vector<1x128xf32> -> vector<1x128xf32>
    %183 = arith.addf %181, %182 : vector<1x128xf32>
    %184 = vector.extract_strided_slice %183 {offsets = [0, 0], sizes = [1, 96], strides = [1, 1]} : vector<1x128xf32> to vector<1x96xf32>
    %185 = arith.negf %184 : vector<1x96xf32>
    %186 = math.exp %185 : vector<1x96xf32>
    %cst_63 = arith.constant 1.000000e+00 : f32
    %187 = vector.broadcast %cst_63 : f32 to vector<1x96xf32>
    %188 = arith.addf %187, %186 : vector<1x96xf32>
    %189 = arith.divf %187, %188 : vector<1x96xf32>
    %190 = vector.extract_strided_slice %183 {offsets = [0, 96], sizes = [1, 32], strides = [1, 1]} : vector<1x128xf32> to vector<1x32xf32>
    %191 = math.tanh %190 : vector<1x32xf32>
    %192 = vector.extract_strided_slice %189 {offsets = [0, 0], sizes = [1, 32], strides = [1, 1]} : vector<1x96xf32> to vector<1x32xf32>
    %193 = vector.extract_strided_slice %189 {offsets = [0, 32], sizes = [1, 32], strides = [1, 1]} : vector<1x96xf32> to vector<1x32xf32>
    %194 = vector.extract_strided_slice %189 {offsets = [0, 64], sizes = [1, 32], strides = [1, 1]} : vector<1x96xf32> to vector<1x32xf32>
    %195 = arith.mulf %193, %177 : vector<1x32xf32>
    %196 = arith.mulf %192, %191 : vector<1x32xf32>
    %197 = arith.addf %195, %196 : vector<1x32xf32>
    %198 = math.tanh %197 : vector<1x32xf32>
    %199 = arith.mulf %194, %198 : vector<1x32xf32>
    %c7_64 = arith.constant 7 : index
    %c0_65 = arith.constant 0 : index
    %200 = vector.load %arg9[%c7_64, %c0_65] : memref<8x32xf32, #tpu.memory_space<vmem>>, vector<1x32xf32>
    tpu.vector_store %arg9[%c7_64, %c0_65], %199 {strides = array<i32>} : memref<8x32xf32, #tpu.memory_space<vmem>>, vector<1x32xf32>,
    %c0_66 = arith.constant 0 : index
    %c0_67 = arith.constant 0 : index
    %201 = vector.load %arg9[%c0_66, %c0_67] : memref<8x32xf32, #tpu.memory_space<vmem>>, vector<8x32xf32>
    %c0_68 = arith.constant 0 : index
    %c0_69 = arith.constant 0 : index
    %202 = vector.load %arg5[%c0_68, %c0_69] : memref<32x8xf32, #tpu.memory_space<vmem>>, vector<32x8xf32>
    %cst_70 = arith.constant dense<0.000000e+00> : vector<8x8xf32>
    %203 = tpu.matmul %201, %202, %cst_70 {dimension_numbers = #tpu.dot_dimension_numbers<[1], [0], [0], [1], [0, 0, 1, 1], [], []>} : vector<8x32xf32>, vector<32x8xf32>, vector<8x8xf32> -> vector<8x8xf32>
    %c0_71 = arith.constant 0 : index
    %c0_72 = arith.constant 0 : index
    %204 = vector.load %arg6[%c0_71, %c0_72] : memref<1x8xf32, #tpu.memory_space<vmem>>, vector<1x8xf32>
    %205 = vector.broadcast %204 : vector<1x8xf32> to vector<8x8xf32>
    %206 = arith.addf %203, %205 : vector<8x8xf32>
    %cst_73 = arith.constant dense<0xFF800000> : vector<8xf32>
    %207 = vector.multi_reduction <maximumf>, %206, %cst_73 [1] : vector<8x8xf32> to vector<8xf32>
    %208 = vector.shape_cast %207 : vector<8xf32> to vector<8x1xf32>
    %209 = vector.broadcast %208 : vector<8x1xf32> to vector<8x8xf32>
    %210 = arith.subf %206, %209 : vector<8x8xf32>
    %211 = math.exp %210 : vector<8x8xf32>
    %cst_74 = arith.constant dense<0.000000e+00> : vector<8xf32>
    %212 = vector.multi_reduction <add>, %211, %cst_74 [1] : vector<8x8xf32> to vector<8xf32>
    %213 = vector.shape_cast %212 : vector<8xf32> to vector<8x1xf32>
    %214 = math.log %213 : vector<8x1xf32>
    %215 = vector.broadcast %214 : vector<8x1xf32> to vector<8x8xf32>
    %216 = arith.subf %210, %215 : vector<8x8xf32>
    %c0_75 = arith.constant 0 : index
    %c0_76 = arith.constant 0 : index
    %217 = vector.load %arg7[%c0_75, %c0_76] : memref<8x8xf32, #tpu.memory_space<vmem>>, vector<8x8xf32>
    tpu.vector_store %arg7[%c0_75, %c0_76], %216 {strides = array<i32>} : memref<8x8xf32, #tpu.memory_space<vmem>>, vector<8x8xf32>,
    return
  }
}

</mosaic_0001>

<llo_original>
// kernel: lstm_tagger_forward.1
$region0: #{lstm_tagger_forward.1}
  #allocation0 [shape = 'u32[]', space=smem, size = 0x4, offset = 0x4, fixed_abs, tag = 'smem constant byte address 0x4 - core index']
  #allocation1 [shape = 'u32[144,128]{1,0:T(1,128)}', space=vmem, size = 0x12000, scoped, tag = 'internal scratch']
  #allocation2 [shape = 'f32[8,32]{1,0:T(8,128)}', space=vmem, size = 0x1000, scoped, tag = 'scratch operand']
  #allocation3 [shape = 'f32[8,32]{1,0:T(8,128)}', space=vmem, size = 0x1000, scoped, tag = 'scratch operand']
  %s0 = inlined_call_operand.vmem [shape: s32[8], index: 0, kind: input, shape index: {}]
  %s1 = inlined_call_operand.vmem [shape: f32[20,32], index: 1, kind: input, shape index: {}]
  %s2 = inlined_call_operand.vmem [shape: f32[32,128], index: 2, kind: input, shape index: {}]
  %s3 = inlined_call_operand.vmem [shape: f32[32,128], index: 3, kind: input, shape index: {}]
  %s4 = inlined_call_operand.vmem [shape: f32[1,128], index: 4, kind: input, shape index: {}]
  %s5 = inlined_call_operand.vmem [shape: f32[32,8], index: 5, kind: input, shape index: {}]
  %s6 = inlined_call_operand.vmem [shape: f32[1,8], index: 6, kind: input, shape index: {}]
  %s7 = inlined_call_operand.hbm [shape: f32[8,8], index: 7, kind: output, shape index: {}]
  %s8 = sld [smem:[#allocation0]]
  $region42: #{lstm_tagger_forward.1} parent=0
    _
  %s10 = ssub.s32 1, %s8
  %s11 = scalar_select 0, %s10, %s8
  $region1: #{lstm_tagger_forward.1} parent=0
    #allocation4 [shape = 'u8[512]{0}', space=smem, size = 0x200, scoped, tag = 'input window, operand 0, single buffered']
    #allocation5 [shape = 's32[1]{0}', space=sflag, size = 0x4, scoped, tag = 'scoped memory for lstm_tagger_forward.1']
    #allocation6 [shape = 's32[1]{0}', space=sflag, size = 0x4, scoped, tag = 'scoped memory for lstm_tagger_forward.1']
    #allocation7 [shape = 'u8[4096]{0}', space=vmem, size = 0x1000, scoped, tag = 'output window, operand 0, single buffered']
    %12 = vsyncpa [#allocation6], 0
    %13 = vsyncpa [#allocation5], 0
    // Predicated region
    $region2: #{lstm_tagger_forward.1} parent=1 // pred_check
      _
    $region3: #{lstm_tagger_forward.1} parent=1 // pred_check_branch
      %15 = sbr.rel (0) target = $region5
    $region4: #{lstm_tagger_forward.1} parent=1 // pred_region
      %s17 = ssub.s32 16, 16
      %18 = vsyncadd [#allocation6], %s17
      %s20 = sshll.u32 %s0, 4
      %s21 = int_to_ptr.vmem [resolvable:$true] %s20
      %23 = dma.vmem_to_smem %s21, 16, [#allocation4], [#allocation6]
    $region5: #{lstm_tagger_forward.1} parent=1 // pred_fallthru
      _
    // Predicated region
    $region6: #{lstm_tagger_forward.1} parent=1 // pred_check
      _
    $region7: #{lstm_tagger_forward.1} parent=1 // pred_check_branch
      %25 = sbr.rel (0) target = $region9
    $region8: #{lstm_tagger_forward.1} parent=1 // pred_region
      _
    $region9: #{lstm_tagger_forward.1} parent=1 // pred_fallthru
      _
    // Predicated region
    $region10: #{lstm_tagger_forward.1} parent=1 // pred_check
      _
    $region11: #{lstm_tagger_forward.1} parent=1 // pred_check_branch
      %27 = sbr.rel (0) target = $region13
    $region12: #{lstm_tagger_forward.1} parent=1 // pred_region
      _
    $region13: #{lstm_tagger_forward.1} parent=1 // pred_fallthru
      _
    // Predicated region
    $region14: #{lstm_tagger_forward.1} parent=1 // pred_check
      _
    $region15: #{lstm_tagger_forward.1} parent=1 // pred_check_branch
      %29 = sbr.rel (0) target = $region17
    $region16: #{lstm_tagger_forward.1} parent=1 // pred_region
      _
    $region17: #{lstm_tagger_forward.1} parent=1 // pred_fallthru
      _
    // Predicated region
    $region18: #{lstm_tagger_forward.1} parent=1 // pred_check
      _
    $region19: #{lstm_tagger_forward.1} parent=1 // pred_check_branch
      %31 = sbr.rel (0) target = $region21
    $region20: #{lstm_tagger_forward.1} parent=1 // pred_region
      _
    $region21: #{lstm_tagger_forward.1} parent=1 // pred_fallthru
      _
    // Predicated region
    $region22: #{lstm_tagger_forward.1} parent=1 // pred_check
      _
    $region23: #{lstm_tagger_forward.1} parent=1 // pred_check_branch
      %33 = sbr.rel (0) target = $region25
    $region24: #{lstm_tagger_forward.1} parent=1 // pred_region
      _
    $region25: #{lstm_tagger_forward.1} parent=1 // pred_fallthru
      _
    // Predicated region
    $region26: #{lstm_tagger_forward.1} parent=1 // pred_check
      _
    $region27: #{lstm_tagger_forward.1} parent=1 // pred_check_branch
      %35 = sbr.rel (0) target = $region29
    $region28: #{lstm_tagger_forward.1} parent=1 // pred_region
      _
    $region29: #{lstm_tagger_forward.1} parent=1 // pred_fallthru
      _
    // Predicated region
    $region30: #{lstm_tagger_forward.1} parent=1 // pred_check
      _
    $region31: #{lstm_tagger_forward.1} parent=1 // pred_check_branch
      %37 = sbr.rel (0) target = $region33
    $region32: #{lstm_tagger_forward.1} parent=1 // pred_region
      %38 = dma.done [#allocation6], 16
    $region33: #{lstm_tagger_forward.1} parent=1 // pred_fallthru
      _
    %39 = sfence
    %s40 = sld [smem:[#allocation4]]
    %s41 = scalar_lea.vmem %s1, %s40
    %v42 = vld [vmem:[%s41] sm:$0x1]
    %vm43 = vcmask 253952
    %44 = vst.msk [vmem:[#allocation2] sm:$0x1] %vm43, %v42
    %s45 = sld [smem:[#allocation4 + $0x1]]
    %s46 = scalar_lea.vmem %s1, %s45
    %v47 = vld [vmem:[%s46] sm:$0x1]
    %48 = vst.msk [vmem:[#allocation2 + $0x1] sm:$0x1] %vm43, %v47
    %s49 = sld [smem:[#allocation4 + $0x2]]
    %s50 = scalar_lea.vmem %s1, %s49
    %v51 = vld [vmem:[%s50] sm:$0x1]
    %52 = vst.msk [vmem:[#allocation2 + $0x2] sm:$0x1] %vm43, %v51
    %s53 = sld [smem:[#allocation4 + $0x3]]
    %s54 = scalar_lea.vmem %s1, %s53
    %v55 = vld [vmem:[%s54] sm:$0x1]
    %56 = vst.msk [vmem:[#allocation2 + $0x3] sm:$0x1] %vm43, %v55
    %s57 = sld [smem:[#allocation4 + $0x4]]
    %s58 = scalar_lea.vmem %s1, %s57
    %v59 = vld [vmem:[%s58] sm:$0x1]
    %60 = vst.msk [vmem:[#allocation2 + $0x4] sm:$0x1] %vm43, %v59
    %s61 = sld [smem:[#allocation4 + $0x5]]
    %s62 = scalar_lea.vmem %s1, %s61
    %v63 = vld [vmem:[%s62] sm:$0x1]
    %64 = vst.msk [vmem:[#allocation2 + $0x5] sm:$0x1] %vm43, %v63
    %s65 = sld [smem:[#allocation4 + $0x6]]
    %s66 = scalar_lea.vmem %s1, %s65
    %v67 = vld [vmem:[%s66] sm:$0x1]
    %68 = vst.msk [vmem:[#allocation2 + $0x6] sm:$0x1] %vm43, %v67
    %s69 = sld [smem:[#allocation4 + $0x7]]
    %s70 = scalar_lea.vmem %s1, %s69
    %v71 = vld [vmem:[%s70] sm:$0x1]
    %72 = vst.msk [vmem:[#allocation2 + $0x7] sm:$0x1] %vm43, %v71
    %v73 = vld [vmem:[#allocation2] sm:$0xff]
    %v74 = vld [vmem:[%s2] sm:$0xff]
    %v75 = vld [vmem:[%s2 + $0x8] sm:$0xff]
    %v76 = vld [vmem:[%s2 + $0x10] sm:$0xff]
    %v77 = vld [vmem:[%s2 + $0x18] sm:$0xff]
    %v78 = vld [vmem:[%s4] sm:$0x1]
    %v80 = vlaneseq
    %v81 = vshrl.u32 %v80, 7
    %v82 = vsub.s32 0, %v81
    %v83 = vrot.slane %v78, %v82
    %vm85 = vcmask 261120
    %v87 = vsel %vm85, %v73, 0
    %89 = vmatprep.subr.mxu0 0.0
    %90 = vmatpush1.msra.mxu0 %v74
    %91 = vmatprep.subr.mxu0 0.0
    %92 = vmatpush1.msra.mxu0 %v75
    %93 = vmatprep.subr.mxu0 0.0
    %94 = vmatpush1.msra.mxu0 %v76
    %95 = vmatprep.subr.mxu0 0.0
    %96 = vmatpush1.msra.mxu0 %v77
    %97 = vmatprep.subr.mxu0 0.0
    %98 = vmatpush1.msra.mxu0 0.0
    %99 = vmatprep.subr.mxu0 0.0
    %100 = vmatpush1.msra.mxu0 0.0
    %101 = vmatprep.subr.mxu0 0.0
    %102 = vmatpush1.msra.mxu0 0.0
    %103 = vmatprep.subr.mxu0 0.0
    %104 = vmatpush1.msra.mxu0 0.0
    %105 = vmatprep.subr.mxu0 0.0
    %106 = vmatpush1.msra.mxu0 0.0
    %107 = vmatprep.subr.mxu0 0.0
    %108 = vmatpush1.msra.mxu0 0.0
    %109 = vmatprep.subr.mxu0 0.0
    %110 = vmatpush1.msra.mxu0 0.0
    %111 = vmatprep.subr.mxu0 0.0
    %112 = vmatpush1.msra.mxu0 0.0
    %113 = vmatprep.subr.mxu0 0.0
    %114 = vmatpush1.msra.mxu0 0.0
    %115 = vmatprep.subr.mxu0 0.0
    %116 = vmatpush1.msra.mxu0 0.0
    %117 = vmatprep.subr.mxu0 0.0
    %118 = vmatpush1.msra.mxu0 0.0
    %119 = vmatprep.subr.mxu0 0.0
    %120 = vmatpush1.msra.mxu0 0.0
    %121 = vmatprep.subr.mxu0 0.0
    %122 = vmatpush1.msra.mxu0 0.0
    %123 = vmatprep.subr.mxu0 0.0
    %124 = vmatpush1.msra.mxu0 0.0
    %125 = vmatprep.subr.mxu0 0.0
    %126 = vmatpush1.msra.mxu0 0.0
    %127 = vmatprep.subr.mxu0 0.0
    %128 = vmatpush1.msra.mxu0 0.0
    %129 = vmatprep.subr.mxu0 0.0
    %130 = vmatpush1.msra.mxu0 0.0
    %131 = vmatprep.subr.mxu0 0.0
    %132 = vmatpush1.msra.mxu0 0.0
    %133 = vmatprep.subr.mxu0 0.0
    %134 = vmatpush1.msra.mxu0 0.0
    %135 = vmatprep.subr.mxu0 0.0
    %136 = vmatpush1.msra.mxu0 0.0
    %137 = vmatprep.subr.mxu0 0.0
    %138 = vmatpush1.msra.mxu0 0.0
    %139 = vmatprep.subr.mxu0 0.0
    %140 = vmatpush1.msra.mxu0 0.0
    %141 = vmatprep.subr.mxu0 0.0
    %142 = vmatpush1.msra.mxu0 0.0
    %143 = vmatprep.subr.mxu0 0.0
    %144 = vmatpush1.msra.mxu0 0.0
    %145 = vmatprep.subr.mxu0 0.0
    %146 = vmatpush1.msra.mxu0 0.0
    %147 = vmatprep.subr.mxu0 0.0
    %148 = vmatpush1.msra.mxu0 0.0
    %149 = vmatprep.subr.mxu0 0.0
    %150 = vmatpush1.msra.mxu0 0.0
    %151 = vmatprep.subr.mxu0 0.0
    %152 = vmatpush1.msra.mxu0 0.0
    %153 = vmatprep.mubr.f32.mxu0 0.0
    %154 = vmatmul.mubr.f32.gmra.mrb[0].mxu0 %v87
    %v155 = vpop.f32.mrb[0].mxu0
    %v156 = vadd.f32 %v83, %v155
    %v157 = vpop.f32.mrb[0].mxu0
    %158 = vdwg.mxu0
    %v159 = vld [vmem:[%s3] sm:$0xff]
    %v160 = vld [vmem:[%s3 + $0x8] sm:$0xff]
    %v161 = vld [vmem:[%s3 + $0x10] sm:$0xff]
    %v162 = vld [vmem:[%s3 + $0x18] sm:$0xff]
    %v164 = vsel %vm85, 0.0, 0
    %166 = vmatprep.subr.mxu0 0.0
    %167 = vmatpush1.msra.mxu0 %v159
    %168 = vmatprep.subr.mxu0 0.0
    %169 = vmatpush1.msra.mxu0 %v160
    %170 = vmatprep.subr.mxu0 0.0
    %171 = vmatpush1.msra.mxu0 %v161
    %172 = vmatprep.subr.mxu0 0.0
    %173 = vmatpush1.msra.mxu0 %v162
    %174 = vmatprep.subr.mxu0 0.0
    %175 = vmatpush1.msra.mxu0 0.0
    %176 = vmatprep.subr.mxu0 0.0
    %177 = vmatpush1.msra.mxu0 0.0
    %178 = vmatprep.subr.mxu0 0.0
    %179 = vmatpush1.msra.mxu0 0.0
    %180 = vmatprep.subr.mxu0 0.0
    %181 = vmatpush1.msra.mxu0 0.0
    %182 = vmatprep.subr.mxu0 0.0
    %183 = vmatpush1.msra.mxu0 0.0
    %184 = vmatprep.subr.mxu0 0.0
    %185 = vmatpush1.msra.mxu0 0.0
    %186 = vmatprep.subr.mxu0 0.0
    %187 = vmatpush1.msra.mxu0 0.0
    %188 = vmatprep.subr.mxu0 0.0
    %189 = vmatpush1.msra.mxu0 0.0
    %190 = vmatprep.subr.mxu0 0.0
    %191 = vmatpush1.msra.mxu0 0.0
    %192 = vmatprep.subr.mxu0 0.0
    %193 = vmatpush1.msra.mxu0 0.0
    %194 = vmatprep.subr.mxu0 0.0
    %195 = vmatpush1.msra.mxu0 0.0
    %196 = vmatprep.subr.mxu0 0.0
    %197 = vmatpush1.msra.mxu0 0.0
    %198 = vmatprep.subr.mxu0 0.0
    %199 = vmatpush1.msra.mxu0 0.0
    %200 = vmatprep.subr.mxu0 0.0
    %201 = vmatpush1.msra.mxu0 0.0
    %202 = vmatprep.subr.mxu0 0.0
    %203 = vmatpush1.msra.mxu0 0.0
    %204 = vmatprep.subr.mxu0 0.0
    %205 = vmatpush1.msra.mxu0 0.0
    %206 = vmatprep.subr.mxu0 0.0
    %207 = vmatpush1.msra.mxu0 0.0
    %208 = vmatprep.subr.mxu0 0.0
    %209 = vmatpush1.msra.mxu0 0.0
    %210 = vmatprep.subr.mxu0 0.0
    %211 = vmatpush1.msra.mxu0 0.0
    %212 = vmatprep.subr.mxu0 0.0
    %213 = vmatpush1.msra.mxu0 0.0
    %214 = vmatprep.subr.mxu0 0.0
    %215 = vmatpush1.msra.mxu0 0.0
    %216 = vmatprep.subr.mxu0 0.0
    %217 = vmatpush1.msra.mxu0 0.0
    %218 = vmatprep.subr.mxu0 0.0
    %219 = vmatpush1.msra.mxu0 0.0
    %220 = vmatprep.subr.mxu0 0.0
    %221 = vmatpush1.msra.mxu0 0.0
    %222 = vmatprep.subr.mxu0 0.0
    %223 = vmatpush1.msra.mxu0 0.0
    %224 = vmatprep.subr.mxu0 0.0
    %225 = vmatpush1.msra.mxu0 0.0
    %226 = vmatprep.subr.mxu0 0.0
    %227 = vmatpush1.msra.mxu0 0.0
    %228 = vmatprep.subr.mxu0 0.0
    %229 = vmatpush1.msra.mxu0 0.0
    %230 = vmatprep.mubr.f32.mxu0 0.0
    %231 = vmatmul.mubr.f32.gmra.mrb[0].mxu0 %v164
    %v232 = vpop.f32.mrb[0].mxu0
    %v233 = vadd.f32 0.0, %v232
    %v234 = vpop.f32.mrb[0].mxu0
    %235 = vdwg.mxu0
    %v236 = vadd.f32 %v156, %v233
    %v237 = vxor.u32 %v236, 2147483648
    %v238 = vmul.f32 %v237, 1.442695
    %v239 = vpow.pop %v238
    %v240 = vadd.f32 %v239, 1.0
    %v241 = vrcp.pop %v240
    %v242 = vmul.f32 1.0, %v241
    %v243 = vtanh.pop %v236
    %v244 = vmul.f32 %v242, 0.0
    %246 = vrot.lane.b32.xlu0 %v243, 32
    %v247 = vpop.permute.xlu0 %246
    %v249 = vmul.f32 %v242, %v247
    %251 = vrot.lane.b32.xlu0 %v249, 32
    %v252 = vpop.permute.xlu0 %251
    %v254 = vadd.f32 %v244, %v252
    %v255 = vtanh.pop %v254
    %257 = vrot.lane.b32.xlu0 %v255, 32
    %v258 = vpop.permute.xlu0 %257
    %v260 = vmul.f32 %v242, %v258
    %262 = vrot.lane.b32.xlu0 %v260, 64
    %v263 = vpop.permute.xlu0 %262
    %265 = vst.msk [vmem:[#allocation3] sm:$0x1] %vm43, %v263
    %v266 = vsel %vm85, %v263, 0
    %268 = vmatprep.subr.mxu0 0.0
    %269 = vmatpush1.msra.mxu0 %v159
    %270 = vmatprep.subr.mxu0 0.0
    %271 = vmatpush1.msra.mxu0 %v160
    %272 = vmatprep.subr.mxu0 0.0
    %273 = vmatpush1.msra.mxu0 %v161
    %274 = vmatprep.subr.mxu0 0.0
    %275 = vmatpush1.msra.mxu0 %v162
    %276 = vmatprep.subr.mxu0 0.0
    %277 = vmatpush1.msra.mxu0 0.0
    %278 = vmatprep.subr.mxu0 0.0
    %279 = vmatpush1.msra.mxu0 0.0
    %280 = vmatprep.subr.mxu0 0.0
    %281 = vmatpush1.msra.mxu0 0.0
    %282 = vmatprep.subr.mxu0 0.0
    %283 = vmatpush1.msra.mxu0 0.0
    %284 = vmatprep.subr.mxu0 0.0
    %285 = vmatpush1.msra.mxu0 0.0
    %286 = vmatprep.subr.mxu0 0.0
    %287 = vmatpush1.msra.mxu0 0.0
    %288 = vmatprep.subr.mxu0 0.0
    %289 = vmatpush1.msra.mxu0 0.0
    %290 = vmatprep.subr.mxu0 0.0
    %291 = vmatpush1.msra.mxu0 0.0
    %292 = vmatprep.subr.mxu0 0.0
    %293 = vmatpush1.msra.mxu0 0.0
    %294 = vmatprep.subr.mxu0 0.0
    %295 = vmatpush1.msra.mxu0 0.0
    %296 = vmatprep.subr.mxu0 0.0
    %297 = vmatpush1.msra.mxu0 0.0
    %298 = vmatprep.subr.mxu0 0.0
    %299 = vmatpush1.msra.mxu0 0.0
    %300 = vmatprep.subr.mxu0 0.0
    %301 = vmatpush1.msra.mxu0 0.0
    %302 = vmatprep.subr.mxu0 0.0
    %303 = vmatpush1.msra.mxu0 0.0
    %304 = vmatprep.subr.mxu0 0.0
    %305 = vmatpush1.msra.mxu0 0.0
    %306 = vmatprep.subr.mxu0 0.0
    %307 = vmatpush1.msra.mxu0 0.0
    %308 = vmatprep.subr.mxu0 0.0
    %309 = vmatpush1.msra.mxu0 0.0
    %310 = vmatprep.subr.mxu0 0.0
    %311 = vmatpush1.msra.mxu0 0.0
    %312 = vmatprep.subr.mxu0 0.0
    %313 = vmatpush1.msra.mxu0 0.0
    %314 = vmatprep.subr.mxu0 0.0
    %315 = vmatpush1.msra.mxu0 0.0
    %316 = vmatprep.subr.mxu0 0.0
    %317 = vmatpush1.msra.mxu0 0.0
    %318 = vmatprep.subr.mxu0 0.0
    %319 = vmatpush1.msra.mxu0 0.0
    %320 = vmatprep.subr.mxu0 0.0
    %321 = vmatpush1.msra.mxu0 0.0
    %322 = vmatprep.subr.mxu0 0.0
    %323 = vmatpush1.msra.mxu0 0.0
    %324 = vmatprep.subr.mxu0 0.0
    %325 = vmatpush1.msra.mxu0 0.0
    %326 = vmatprep.subr.mxu0 0.0
    %327 = vmatpush1.msra.mxu0 0.0
    %328 = vmatprep.subr.mxu0 0.0
    %329 = vmatpush1.msra.mxu0 0.0
    %330 = vmatprep.subr.mxu0 0.0
    %331 = vmatpush1.msra.mxu0 0.0
    %332 = vmatprep.mubr.f32.mxu0 0.0
    %333 = vmatmul.mubr.f32.gmra.mrb[0].mxu0 %v266
    %v334 = vpop.f32.mrb[0].mxu0
    %v335 = vadd.f32 0.0, %v334
    %v336 = vpop.f32.mrb[0].mxu0
    %337 = vdwg.mxu0
    %v339 = vrot.slane %v335, 7
    %v341 = vadd.f32 %v156, %v339
    %v342 = vxor.u32 %v341, 2147483648
    %v343 = vmul.f32 %v342, 1.442695
    %v344 = vpow.pop %v343
    %v345 = vadd.f32 %v344, 1.0
    %v346 = vrcp.pop %v345
    %v347 = vmul.f32 1.0, %v346
    %v348 = vtanh.pop %v341
    %v350 = vrot.slane %v254, 7
    %v352 = vmul.f32 %v347, %v350
    %354 = vrot.lane.b32.xlu0 %v348, 32
    %v355 = vpop.permute.xlu0 %354
    %v357 = vmul.f32 %v347, %v355
    %359 = vrot.lane.b32.xlu0 %v357, 32
    %v360 = vpop.permute.xlu0 %359
    %v362 = vadd.f32 %v352, %v360
    %v363 = vtanh.pop %v362
    %365 = vrot.lane.b32.xlu0 %v363, 32
    %v366 = vpop.permute.xlu0 %365
    %v368 = vmul.f32 %v347, %v366
    %370 = vrot.lane.b32.xlu0 %v368, 64
    %v371 = vpop.permute.xlu0 %370
    %vm373 = vcmask 254977
    %374 = vst.msk [vmem:[#allocation3] sm:$0x2] %vm373, %v371
    %v375 = vrot.slane %v368, 1
    %376 = vrot.lane.b32.xlu0 %v375, 64
    %v377 = vpop.permute.xlu0 %376
    %v378 = vsel %vm85, %v377, 0
    %380 = vmatprep.subr.mxu0 0.0
    %381 = vmatpush1.msra.mxu0 %v159
    %382 = vmatprep.subr.mxu0 0.0
    %383 = vmatpush1.msra.mxu0 %v160
    %384 = vmatprep.subr.mxu0 0.0
    %385 = vmatpush1.msra.mxu0 %v161
    %386 = vmatprep.subr.mxu0 0.0
    %387 = vmatpush1.msra.mxu0 %v162
    %388 = vmatprep.subr.mxu0 0.0
    %389 = vmatpush1.msra.mxu0 0.0
    %390 = vmatprep.subr.mxu0 0.0
    %391 = vmatpush1.msra.mxu0 0.0
    %392 = vmatprep.subr.mxu0 0.0
    %393 = vmatpush1.msra.mxu0 0.0
    %394 = vmatprep.subr.mxu0 0.0
    %395 = vmatpush1.msra.mxu0 0.0
    %396 = vmatprep.subr.mxu0 0.0
    %397 = vmatpush1.msra.mxu0 0.0
    %398 = vmatprep.subr.mxu0 0.0
    %399 = vmatpush1.msra.mxu0 0.0
    %400 = vmatprep.subr.mxu0 0.0
    %401 = vmatpush1.msra.mxu0 0.0
    %402 = vmatprep.subr.mxu0 0.0
    %403 = vmatpush1.msra.mxu0 0.0
    %404 = vmatprep.subr.mxu0 0.0
    %405 = vmatpush1.msra.mxu0 0.0
    %406 = vmatprep.subr.mxu0 0.0
    %407 = vmatpush1.msra.mxu0 0.0
    %408 = vmatprep.subr.mxu0 0.0
    %409 = vmatpush1.msra.mxu0 0.0
    %410 = vmatprep.subr.mxu0 0.0
    %411 = vmatpush1.msra.mxu0 0.0
    %412 = vmatprep.subr.mxu0 0.0
    %413 = vmatpush1.msra.mxu0 0.0
    %414 = vmatprep.subr.mxu0 0.0
    %415 = vmatpush1.msra.mxu0 0.0
    %416 = vmatprep.subr.mxu0 0.0
    %417 = vmatpush1.msra.mxu0 0.0
    %418 = vmatprep.subr.mxu0 0.0
    %419 = vmatpush1.msra.mxu0 0.0
    %420 = vmatprep.subr.mxu0 0.0
    %421 = vmatpush1.msra.mxu0 0.0
    %422 = vmatprep.subr.mxu0 0.0
    %423 = vmatpush1.msra.mxu0 0.0
    %424 = vmatprep.subr.mxu0 0.0
    %425 = vmatpush1.msra.mxu0 0.0
    %426 = vmatprep.subr.mxu0 0.0
    %427 = vmatpush1.msra.mxu0 0.0
    %428 = vmatprep.subr.mxu0 0.0
    %429 = vmatpush1.msra.mxu0 0.0
    %430 = vmatprep.subr.mxu0 0.0
    %431 = vmatpush1.msra.mxu0 0.0
    %432 = vmatprep.subr.mxu0 0.0
    %433 = vmatpush1.msra.mxu0 0.0
    %434 = vmatprep.subr.mxu0 0.0
    %435 = vmatpush1.msra.mxu0 0.0
    %436 = vmatprep.subr.mxu0 0.0
    %437 = vmatpush1.msra.mxu0 0.0
    %438 = vmatprep.subr.mxu0 0.0
    %439 = vmatpush1.msra.mxu0 0.0
    %440 = vmatprep.subr.mxu0 0.0
    %441 = vmatpush1.msra.mxu0 0.0
    %442 = vmatprep.subr.mxu0 0.0
    %443 = vmatpush1.msra.mxu0 0.0
    %444 = vmatprep.mubr.f32.mxu0 0.0
    %445 = vmatmul.mubr.f32.gmra.mrb[0].mxu0 %v378
    %v446 = vpop.f32.mrb[0].mxu0
    %v447 = vadd.f32 0.0, %v446
    %v448 = vpop.f32.mrb[0].mxu0
    %449 = vdwg.mxu0
    %v451 = vrot.slane %v447, 6
    %v453 = vadd.f32 %v156, %v451
    %v454 = vxor.u32 %v453, 2147483648
    %v455 = vmul.f32 %v454, 1.442695
    %v456 = vpow.pop %v455
    %v457 = vadd.f32 %v456, 1.0
    %v458 = vrcp.pop %v457
    %v459 = vmul.f32 1.0, %v458
    %v460 = vtanh.pop %v453
    %v462 = vrot.slane %v362, 7
    %v464 = vmul.f32 %v459, %v462
    %466 = vrot.lane.b32.xlu0 %v460, 32
    %v467 = vpop.permute.xlu0 %466
    %v469 = vmul.f32 %v459, %v467
    %471 = vrot.lane.b32.xlu0 %v469, 32
    %v472 = vpop.permute.xlu0 %471
    %v474 = vadd.f32 %v464, %v472
    %v475 = vtanh.pop %v474
    %477 = vrot.lane.b32.xlu0 %v475, 32
    %v478 = vpop.permute.xlu0 %477
    %v480 = vmul.f32 %v459, %v478
    %482 = vrot.lane.b32.xlu0 %v480, 64
    %v483 = vpop.permute.xlu0 %482
    %vm485 = vcmask 256002
    %486 = vst.msk [vmem:[#allocation3] sm:$0x4] %vm485, %v483
    %v487 = vrot.slane %v480, 2
    %488 = vrot.lane.b32.xlu0 %v487, 64
    %v489 = vpop.permute.xlu0 %488
    %v490 = vsel %vm85, %v489, 0
    %492 = vmatprep.subr.mxu0 0.0
    %493 = vmatpush1.msra.mxu0 %v159
    %494 = vmatprep.subr.mxu0 0.0
    %495 = vmatpush1.msra.mxu0 %v160
    %496 = vmatprep.subr.mxu0 0.0
    %497 = vmatpush1.msra.mxu0 %v161
    %498 = vmatprep.subr.mxu0 0.0
    %499 = vmatpush1.msra.mxu0 %v162
    %500 = vmatprep.subr.mxu0 0.0
    %501 = vmatpush1.msra.mxu0 0.0
    %502 = vmatprep.subr.mxu0 0.0
    %503 = vmatpush1.msra.mxu0 0.0
    %504 = vmatprep.subr.mxu0 0.0
    %505 = vmatpush1.msra.mxu0 0.0
    %506 = vmatprep.subr.mxu0 0.0
    %507 = vmatpush1.msra.mxu0 0.0
    %508 = vmatprep.subr.mxu0 0.0
    %509 = vmatpush1.msra.mxu0 0.0
    %510 = vmatprep.subr.mxu0 0.0
    %511 = vmatpush1.msra.mxu0 0.0
    %512 = vmatprep.subr.mxu0 0.0
    %513 = vmatpush1.msra.mxu0 0.0
    %514 = vmatprep.subr.mxu0 0.0
    %515 = vmatpush1.msra.mxu0 0.0
    %516 = vmatprep.subr.mxu0 0.0
    %517 = vmatpush1.msra.mxu0 0.0
    %518 = vmatprep.subr.mxu0 0.0
    %519 = vmatpush1.msra.mxu0 0.0
    %520 = vmatprep.subr.mxu0 0.0
    %521 = vmatpush1.msra.mxu0 0.0
    %522 = vmatprep.subr.mxu0 0.0
    %523 = vmatpush1.msra.mxu0 0.0
    %524 = vmatprep.subr.mxu0 0.0
    %525 = vmatpush1.msra.mxu0 0.0
    %526 = vmatprep.subr.mxu0 0.0
    %527 = vmatpush1.msra.mxu0 0.0
    %528 = vmatprep.subr.mxu0 0.0
    %529 = vmatpush1.msra.mxu0 0.0
    %530 = vmatprep.subr.mxu0 0.0
    %531 = vmatpush1.msra.mxu0 0.0
    %532 = vmatprep.subr.mxu0 0.0
    %533 = vmatpush1.msra.mxu0 0.0
    %534 = vmatprep.subr.mxu0 0.0
    %535 = vmatpush1.msra.mxu0 0.0
    %536 = vmatprep.subr.mxu0 0.0
    %537 = vmatpush1.msra.mxu0 0.0
    %538 = vmatprep.subr.mxu0 0.0
    %539 = vmatpush1.msra.mxu0 0.0
    %540 = vmatprep.subr.mxu0 0.0
    %541 = vmatpush1.msra.mxu0 0.0
    %542 = vmatprep.subr.mxu0 0.0
    %543 = vmatpush1.msra.mxu0 0.0
    %544 = vmatprep.subr.mxu0 0.0
    %545 = vmatpush1.msra.mxu0 0.0
    %546 = vmatprep.subr.mxu0 0.0
    %547 = vmatpush1.msra.mxu0 0.0
    %548 = vmatprep.subr.mxu0 0.0
    %549 = vmatpush1.msra.mxu0 0.0
    %550 = vmatprep.subr.mxu0 0.0
    %551 = vmatpush1.msra.mxu0 0.0
    %552 = vmatprep.subr.mxu0 0.0
    %553 = vmatpush1.msra.mxu0 0.0
    %554 = vmatprep.subr.mxu0 0.0
    %555 = vmatpush1.msra.mxu0 0.0
    %556 = vmatprep.mubr.f32.mxu0 0.0
    %557 = vmatmul.mubr.f32.gmra.mrb[0].mxu0 %v490
    %v558 = vpop.f32.mrb[0].mxu0
    %v559 = vadd.f32 0.0, %v558
    %v560 = vpop.f32.mrb[0].mxu0
    %561 = vdwg.mxu0
    %v563 = vrot.slane %v559, 5
    %v565 = vadd.f32 %v156, %v563
    %v566 = vxor.u32 %v565, 2147483648
    %v567 = vmul.f32 %v566, 1.442695
    %v568 = vpow.pop %v567
    %v569 = vadd.f32 %v568, 1.0
    %v570 = vrcp.pop %v569
    %v571 = vmul.f32 1.0, %v570
    %v572 = vtanh.pop %v565
    %v574 = vrot.slane %v474, 7
    %v576 = vmul.f32 %v571, %v574
    %578 = vrot.lane.b32.xlu0 %v572, 32
    %v579 = vpop.permute.xlu0 %578
    %v581 = vmul.f32 %v571, %v579
    %583 = vrot.lane.b32.xlu0 %v581, 32
    %v584 = vpop.permute.xlu0 %583
    %v586 = vadd.f32 %v576, %v584
    %v587 = vtanh.pop %v586
    %589 = vrot.lane.b32.xlu0 %v587, 32
    %v590 = vpop.permute.xlu0 %589
    %v592 = vmul.f32 %v571, %v590
    %594 = vrot.lane.b32.xlu0 %v592, 64
    %v595 = vpop.permute.xlu0 %594
    %vm597 = vcmask 257027
    %598 = vst.msk [vmem:[#allocation3] sm:$0x8] %vm597, %v595
    %v599 = vrot.slane %v592, 3
    %600 = vrot.lane.b32.xlu0 %v599, 64
    %v601 = vpop.permute.xlu0 %600
    %v602 = vsel %vm85, %v601, 0
    %604 = vmatprep.subr.mxu0 0.0
    %605 = vmatpush1.msra.mxu0 %v159
    %606 = vmatprep.subr.mxu0 0.0
    %607 = vmatpush1.msra.mxu0 %v160
    %608 = vmatprep.subr.mxu0 0.0
    %609 = vmatpush1.msra.mxu0 %v161
    %610 = vmatprep.subr.mxu0 0.0
    %611 = vmatpush1.msra.mxu0 %v162
    %612 = vmatprep.subr.mxu0 0.0
    %613 = vmatpush1.msra.mxu0 0.0
    %614 = vmatprep.subr.mxu0 0.0
    %615 = vmatpush1.msra.mxu0 0.0
    %616 = vmatprep.subr.mxu0 0.0
    %617 = vmatpush1.msra.mxu0 0.0
    %618 = vmatprep.subr.mxu0 0.0
    %619 = vmatpush1.msra.mxu0 0.0
    %620 = vmatprep.subr.mxu0 0.0
    %621 = vmatpush1.msra.mxu0 0.0
    %622 = vmatprep.subr.mxu0 0.0
    %623 = vmatpush1.msra.mxu0 0.0
    %624 = vmatprep.subr.mxu0 0.0
    %625 = vmatpush1.msra.mxu0 0.0
    %626 = vmatprep.subr.mxu0 0.0
    %627 = vmatpush1.msra.mxu0 0.0
    %628 = vmatprep.subr.mxu0 0.0
    %629 = vmatpush1.msra.mxu0 0.0
    %630 = vmatprep.subr.mxu0 0.0
    %631 = vmatpush1.msra.mxu0 0.0
    %632 = vmatprep.subr.mxu0 0.0
    %633 = vmatpush1.msra.mxu0 0.0
    %634 = vmatprep.subr.mxu0 0.0
    %635 = vmatpush1.msra.mxu0 0.0
    %636 = vmatprep.subr.mxu0 0.0
    %637 = vmatpush1.msra.mxu0 0.0
    %638 = vmatprep.subr.mxu0 0.0
    %639 = vmatpush1.msra.mxu0 0.0
    %640 = vmatprep.subr.mxu0 0.0
    %641 = vmatpush1.msra.mxu0 0.0
    %642 = vmatprep.subr.mxu0 0.0
    %643 = vmatpush1.msra.mxu0 0.0
    %644 = vmatprep.subr.mxu0 0.0
    %645 = vmatpush1.msra.mxu0 0.0
    %646 = vmatprep.subr.mxu0 0.0
    %647 = vmatpush1.msra.mxu0 0.0
    %648 = vmatprep.subr.mxu0 0.0
    %649 = vmatpush1.msra.mxu0 0.0
    %650 = vmatprep.subr.mxu0 0.0
    %651 = vmatpush1.msra.mxu0 0.0
    %652 = vmatprep.subr.mxu0 0.0
    %653 = vmatpush1.msra.mxu0 0.0
    %654 = vmatprep.subr.mxu0 0.0
    %655 = vmatpush1.msra.mxu0 0.0
    %656 = vmatprep.subr.mxu0 0.0
    %657 = vmatpush1.msra.mxu0 0.0
    %658 = vmatprep.subr.mxu0 0.0
    %659 = vmatpush1.msra.mxu0 0.0
    %660 = vmatprep.subr.mxu0 0.0
    %661 = vmatpush1.msra.mxu0 0.0
    %662 = vmatprep.subr.mxu0 0.0
    %663 = vmatpush1.msra.mxu0 0.0
    %664 = vmatprep.subr.mxu0 0.0
    %665 = vmatpush1.msra.mxu0 0.0
    %666 = vmatprep.subr.mxu0 0.0
    %667 = vmatpush1.msra.mxu0 0.0
    %668 = vmatprep.mubr.f32.mxu0 0.0
    %669 = vmatmul.mubr.f32.gmra.mrb[0].mxu0 %v602
    %v670 = vpop.f32.mrb[0].mxu0
    %v671 = vadd.f32 0.0, %v670
    %v672 = vpop.f32.mrb[0].mxu0
    %673 = vdwg.mxu0
    %v675 = vrot.slane %v671, 4
    %v677 = vadd.f32 %v156, %v675
    %v678 = vxor.u32 %v677, 2147483648
    %v679 = vmul.f32 %v678, 1.442695
    %v680 = vpow.pop %v679
    %v681 = vadd.f32 %v680, 1.0
    %v682 = vrcp.pop %v681
    %v683 = vmul.f32 1.0, %v682
    %v684 = vtanh.pop %v677
    %v686 = vrot.slane %v586, 7
    %v688 = vmul.f32 %v683, %v686
    %690 = vrot.lane.b32.xlu0 %v684, 32
    %v691 = vpop.permute.xlu0 %690
    %v693 = vmul.f32 %v683, %v691
    %695 = vrot.lane.b32.xlu0 %v693, 32
    %v696 = vpop.permute.xlu0 %695
    %v698 = vadd.f32 %v688, %v696
    %v699 = vtanh.pop %v698
    %701 = vrot.lane.b32.xlu0 %v699, 32
    %v702 = vpop.permute.xlu0 %701
    %v704 = vmul.f32 %v683, %v702
    %706 = vrot.lane.b32.xlu0 %v704, 64
    %v707 = vpop.permute.xlu0 %706
    %vm709 = vcmask 258052
    %710 = vst.msk [vmem:[#allocation3] sm:$0x10] %vm709, %v707
    %v711 = vrot.slane %v704, 4
    %712 = vrot.lane.b32.xlu0 %v711, 64
    %v713 = vpop.permute.xlu0 %712
    %v714 = vsel %vm85, %v713, 0
    %716 = vmatprep.subr.mxu0 0.0
    %717 = vmatpush1.msra.mxu0 %v159
    %718 = vmatprep.subr.mxu0 0.0
    %719 = vmatpush1.msra.mxu0 %v160
    %720 = vmatprep.subr.mxu0 0.0
    %721 = vmatpush1.msra.mxu0 %v161
    %722 = vmatprep.subr.mxu0 0.0
    %723 = vmatpush1.msra.mxu0 %v162
    %724 = vmatprep.subr.mxu0 0.0
    %725 = vmatpush1.msra.mxu0 0.0
    %726 = vmatprep.subr.mxu0 0.0
    %727 = vmatpush1.msra.mxu0 0.0
    %728 = vmatprep.subr.mxu0 0.0
    %729 = vmatpush1.msra.mxu0 0.0
    %730 = vmatprep.subr.mxu0 0.0
    %731 = vmatpush1.msra.mxu0 0.0
    %732 = vmatprep.subr.mxu0 0.0
    %733 = vmatpush1.msra.mxu0 0.0
    %734 = vmatprep.subr.mxu0 0.0
    %735 = vmatpush1.msra.mxu0 0.0
    %736 = vmatprep.subr.mxu0 0.0
    %737 = vmatpush1.msra.mxu0 0.0
    %738 = vmatprep.subr.mxu0 0.0
    %739 = vmatpush1.msra.mxu0 0.0
    %740 = vmatprep.subr.mxu0 0.0
    %741 = vmatpush1.msra.mxu0 0.0
    %742 = vmatprep.subr.mxu0 0.0
    %743 = vmatpush1.msra.mxu0 0.0
    %744 = vmatprep.subr.mxu0 0.0
    %745 = vmatpush1.msra.mxu0 0.0
    %746 = vmatprep.subr.mxu0 0.0
    %747 = vmatpush1.msra.mxu0 0.0
    %748 = vmatprep.subr.mxu0 0.0
    %749 = vmatpush1.msra.mxu0 0.0
    %750 = vmatprep.subr.mxu0 0.0
    %751 = vmatpush1.msra.mxu0 0.0
    %752 = vmatprep.subr.mxu0 0.0
    %753 = vmatpush1.msra.mxu0 0.0
    %754 = vmatprep.subr.mxu0 0.0
    %755 = vmatpush1.msra.mxu0 0.0
    %756 = vmatprep.subr.mxu0 0.0
    %757 = vmatpush1.msra.mxu0 0.0
    %758 = vmatprep.subr.mxu0 0.0
    %759 = vmatpush1.msra.mxu0 0.0
    %760 = vmatprep.subr.mxu0 0.0
    %761 = vmatpush1.msra.mxu0 0.0
    %762 = vmatprep.subr.mxu0 0.0
    %763 = vmatpush1.msra.mxu0 0.0
    %764 = vmatprep.subr.mxu0 0.0
    %765 = vmatpush1.msra.mxu0 0.0
    %766 = vmatprep.subr.mxu0 0.0
    %767 = vmatpush1.msra.mxu0 0.0
    %768 = vmatprep.subr.mxu0 0.0
    %769 = vmatpush1.msra.mxu0 0.0
    %770 = vmatprep.subr.mxu0 0.0
    %771 = vmatpush1.msra.mxu0 0.0
    %772 = vmatprep.subr.mxu0 0.0
    %773 = vmatpush1.msra.mxu0 0.0
    %774 = vmatprep.subr.mxu0 0.0
    %775 = vmatpush1.msra.mxu0 0.0
    %776 = vmatprep.subr.mxu0 0.0
    %777 = vmatpush1.msra.mxu0 0.0
    %778 = vmatprep.subr.mxu0 0.0
    %779 = vmatpush1.msra.mxu0 0.0
    %780 = vmatprep.mubr.f32.mxu0 0.0
    %781 = vmatmul.mubr.f32.gmra.mrb[0].mxu0 %v714
    %v782 = vpop.f32.mrb[0].mxu0
    %v783 = vadd.f32 0.0, %v782
    %v784 = vpop.f32.mrb[0].mxu0
    %785 = vdwg.mxu0
    %v787 = vrot.slane %v783, 3
    %v789 = vadd.f32 %v156, %v787
    %v790 = vxor.u32 %v789, 2147483648
    %v791 = vmul.f32 %v790, 1.442695
    %v792 = vpow.pop %v791
    %v793 = vadd.f32 %v792, 1.0
    %v794 = vrcp.pop %v793
    %v795 = vmul.f32 1.0, %v794
    %v796 = vtanh.pop %v789
    %v798 = vrot.slane %v698, 7
    %v800 = vmul.f32 %v795, %v798
    %802 = vrot.lane.b32.xlu0 %v796, 32
    %v803 = vpop.permute.xlu0 %802
    %v805 = vmul.f32 %v795, %v803
    %807 = vrot.lane.b32.xlu0 %v805, 32
    %v808 = vpop.permute.xlu0 %807
    %v810 = vadd.f32 %v800, %v808
    %v811 = vtanh.pop %v810
    %813 = vrot.lane.b32.xlu0 %v811, 32
    %v814 = vpop.permute.xlu0 %813
    %v816 = vmul.f32 %v795, %v814
    %818 = vrot.lane.b32.xlu0 %v816, 64
    %v819 = vpop.permute.xlu0 %818
    %vm821 = vcmask 259077
    %822 = vst.msk [vmem:[#allocation3] sm:$0x20] %vm821, %v819
    %v823 = vrot.slane %v816, 5
    %824 = vrot.lane.b32.xlu0 %v823, 64
    %v825 = vpop.permute.xlu0 %824
    %v826 = vsel %vm85, %v825, 0
    %828 = vmatprep.subr.mxu0 0.0
    %829 = vmatpush1.msra.mxu0 %v159
    %830 = vmatprep.subr.mxu0 0.0
    %831 = vmatpush1.msra.mxu0 %v160
    %832 = vmatprep.subr.mxu0 0.0
    %833 = vmatpush1.msra.mxu0 %v161
    %834 = vmatprep.subr.mxu0 0.0
    %835 = vmatpush1.msra.mxu0 %v162
    %836 = vmatprep.subr.mxu0 0.0
    %837 = vmatpush1.msra.mxu0 0.0
    %838 = vmatprep.subr.mxu0 0.0
    %839 = vmatpush1.msra.mxu0 0.0
    %840 = vmatprep.subr.mxu0 0.0
    %841 = vmatpush1.msra.mxu0 0.0
    %842 = vmatprep.subr.mxu0 0.0
    %843 = vmatpush1.msra.mxu0 0.0
    %844 = vmatprep.subr.mxu0 0.0
    %845 = vmatpush1.msra.mxu0 0.0
    %846 = vmatprep.subr.mxu0 0.0
    %847 = vmatpush1.msra.mxu0 0.0
    %848 = vmatprep.subr.mxu0 0.0
    %849 = vmatpush1.msra.mxu0 0.0
    %850 = vmatprep.subr.mxu0 0.0
    %851 = vmatpush1.msra.mxu0 0.0
    %852 = vmatprep.subr.mxu0 0.0
    %853 = vmatpush1.msra.mxu0 0.0
    %854 = vmatprep.subr.mxu0 0.0
    %855 = vmatpush1.msra.mxu0 0.0
    %856 = vmatprep.subr.mxu0 0.0
    %857 = vmatpush1.msra.mxu0 0.0
    %858 = vmatprep.subr.mxu0 0.0
    %859 = vmatpush1.msra.mxu0 0.0
    %860 = vmatprep.subr.mxu0 0.0
    %861 = vmatpush1.msra.mxu0 0.0
    %862 = vmatprep.subr.mxu0 0.0
    %863 = vmatpush1.msra.mxu0 0.0
    %864 = vmatprep.subr.mxu0 0.0
    %865 = vmatpush1.msra.mxu0 0.0
    %866 = vmatprep.subr.mxu0 0.0
    %867 = vmatpush1.msra.mxu0 0.0
    %868 = vmatprep.subr.mxu0 0.0
    %869 = vmatpush1.msra.mxu0 0.0
    %870 = vmatprep.subr.mxu0 0.0
    %871 = vmatpush1.msra.mxu0 0.0
    %872 = vmatprep.subr.mxu0 0.0
    %873 = vmatpush1.msra.mxu0 0.0
    %874 = vmatprep.subr.mxu0 0.0
    %875 = vmatpush1.msra.mxu0 0.0
    %876 = vmatprep.subr.mxu0 0.0
    %877 = vmatpush1.msra.mxu0 0.0
    %878 = vmatprep.subr.mxu0 0.0
    %879 = vmatpush1.msra.mxu0 0.0
    %880 = vmatprep.subr.mxu0 0.0
    %881 = vmatpush1.msra.mxu0 0.0
    %882 = vmatprep.subr.mxu0 0.0
    %883 = vmatpush1.msra.mxu0 0.0
    %884 = vmatprep.subr.mxu0 0.0
    %885 = vmatpush1.msra.mxu0 0.0
    %886 = vmatprep.subr.mxu0 0.0
    %887 = vmatpush1.msra.mxu0 0.0
    %888 = vmatprep.subr.mxu0 0.0
    %889 = vmatpush1.msra.mxu0 0.0
    %890 = vmatprep.subr.mxu0 0.0
    %891 = vmatpush1.msra.mxu0 0.0
    %892 = vmatprep.mubr.f32.mxu0 0.0
    %893 = vmatmul.mubr.f32.gmra.mrb[0].mxu0 %v826
    %v894 = vpop.f32.mrb[0].mxu0
    %v895 = vadd.f32 0.0, %v894
    %v896 = vpop.f32.mrb[0].mxu0
    %897 = vdwg.mxu0
    %v899 = vrot.slane %v895, 2
    %v901 = vadd.f32 %v156, %v899
    %v902 = vxor.u32 %v901, 2147483648
    %v903 = vmul.f32 %v902, 1.442695
    %v904 = vpow.pop %v903
    %v905 = vadd.f32 %v904, 1.0
    %v906 = vrcp.pop %v905
    %v907 = vmul.f32 1.0, %v906
    %v908 = vtanh.pop %v901
    %v910 = vrot.slane %v810, 7
    %v912 = vmul.f32 %v907, %v910
    %914 = vrot.lane.b32.xlu0 %v908, 32
    %v915 = vpop.permute.xlu0 %914
    %v917 = vmul.f32 %v907, %v915
    %919 = vrot.lane.b32.xlu0 %v917, 32
    %v920 = vpop.permute.xlu0 %919
    %v922 = vadd.f32 %v912, %v920
    %v923 = vtanh.pop %v922
    %925 = vrot.lane.b32.xlu0 %v923, 32
    %v926 = vpop.permute.xlu0 %925
    %v928 = vmul.f32 %v907, %v926
    %930 = vrot.lane.b32.xlu0 %v928, 64
    %v931 = vpop.permute.xlu0 %930
    %vm933 = vcmask 260102
    %934 = vst.msk [vmem:[#allocation3] sm:$0x40] %vm933, %v931
    %v935 = vrot.slane %v928, 6
    %936 = vrot.lane.b32.xlu0 %v935, 64
    %v937 = vpop.permute.xlu0 %936
    %v938 = vsel %vm85, %v937, 0
    %940 = vmatprep.subr.mxu0 0.0
    %941 = vmatpush1.msra.mxu0 %v159
    %942 = vmatprep.subr.mxu0 0.0
    %943 = vmatpush1.msra.mxu0 %v160
    %944 = vmatprep.subr.mxu0 0.0
    %945 = vmatpush1.msra.mxu0 %v161
    %946 = vmatprep.subr.mxu0 0.0
    %947 = vmatpush1.msra.mxu0 %v162
    %948 = vmatprep.subr.mxu0 0.0
    %949 = vmatpush1.msra.mxu0 0.0
    %950 = vmatprep.subr.mxu0 0.0
    %951 = vmatpush1.msra.mxu0 0.0
    %952 = vmatprep.subr.mxu0 0.0
    %953 = vmatpush1.msra.mxu0 0.0
    %954 = vmatprep.subr.mxu0 0.0
    %955 = vmatpush1.msra.mxu0 0.0
    %956 = vmatprep.subr.mxu0 0.0
    %957 = vmatpush1.msra.mxu0 0.0
    %958 = vmatprep.subr.mxu0 0.0
    %959 = vmatpush1.msra.mxu0 0.0
    %960 = vmatprep.subr.mxu0 0.0
    %961 = vmatpush1.msra.mxu0 0.0
    %962 = vmatprep.subr.mxu0 0.0
    %963 = vmatpush1.msra.mxu0 0.0
    %964 = vmatprep.subr.mxu0 0.0
    %965 = vmatpush1.msra.mxu0 0.0
    %966 = vmatprep.subr.mxu0 0.0
    %967 = vmatpush1.msra.mxu0 0.0
    %968 = vmatprep.subr.mxu0 0.0
    %969 = vmatpush1.msra.mxu0 0.0
    %970 = vmatprep.subr.mxu0 0.0
    %971 = vmatpush1.msra.mxu0 0.0
    %972 = vmatprep.subr.mxu0 0.0
    %973 = vmatpush1.msra.mxu0 0.0
    %974 = vmatprep.subr.mxu0 0.0
    %975 = vmatpush1.msra.mxu0 0.0
    %976 = vmatprep.subr.mxu0 0.0
    %977 = vmatpush1.msra.mxu0 0.0
    %978 = vmatprep.subr.mxu0 0.0
    %979 = vmatpush1.msra.mxu0 0.0
    %980 = vmatprep.subr.mxu0 0.0
    %981 = vmatpush1.msra.mxu0 0.0
    %982 = vmatprep.subr.mxu0 0.0
    %983 = vmatpush1.msra.mxu0 0.0
    %984 = vmatprep.subr.mxu0 0.0
    %985 = vmatpush1.msra.mxu0 0.0
    %986 = vmatprep.subr.mxu0 0.0
    %987 = vmatpush1.msra.mxu0 0.0
    %988 = vmatprep.subr.mxu0 0.0
    %989 = vmatpush1.msra.mxu0 0.0
    %990 = vmatprep.subr.mxu0 0.0
    %991 = vmatpush1.msra.mxu0 0.0
    %992 = vmatprep.subr.mxu0 0.0
    %993 = vmatpush1.msra.mxu0 0.0
    %994 = vmatprep.subr.mxu0 0.0
    %995 = vmatpush1.msra.mxu0 0.0
    %996 = vmatprep.subr.mxu0 0.0
    %997 = vmatpush1.msra.mxu0 0.0
    %998 = vmatprep.subr.mxu0 0.0
    %999 = vmatpush1.msra.mxu0 0.0
    %1000 = vmatprep.subr.mxu0 0.0
    %1001 = vmatpush1.msra.mxu0 0.0
    %1002 = vmatprep.subr.mxu0 0.0
    %1003 = vmatpush1.msra.mxu0 0.0
    %1004 = vmatprep.mubr.f32.mxu0 0.0
    %1005 = vmatmul.mubr.f32.gmra.mrb[0].mxu0 %v938
    %v1006 = vpop.f32.mrb[0].mxu0
    %v1007 = vadd.f32 0.0, %v1006
    %v1008 = vpop.f32.mrb[0].mxu0
    %1009 = vdwg.mxu0
    %v1011 = vrot.slane %v1007, 1
    %v1013 = vadd.f32 %v156, %v1011
    %v1014 = vxor.u32 %v1013, 2147483648
    %v1015 = vmul.f32 %v1014, 1.442695
    %v1016 = vpow.pop %v1015
    %v1017 = vadd.f32 %v1016, 1.0
    %v1018 = vrcp.pop %v1017
    %v1019 = vmul.f32 1.0, %v1018
    %v1020 = vtanh.pop %v1013
    %v1022 = vrot.slane %v922, 7
    %v1024 = vmul.f32 %v1019, %v1022
    %1026 = vrot.lane.b32.xlu0 %v1020, 32
    %v1027 = vpop.permute.xlu0 %1026
    %v1029 = vmul.f32 %v1019, %v1027
    %1031 = vrot.lane.b32.xlu0 %v1029, 32
    %v1032 = vpop.permute.xlu0 %1031
    %v1034 = vadd.f32 %v1024, %v1032
    %v1035 = vtanh.pop %v1034
    %1037 = vrot.lane.b32.xlu0 %v1035, 32
    %v1038 = vpop.permute.xlu0 %1037
    %v1040 = vmul.f32 %v1019, %v1038
    %1042 = vrot.lane.b32.xlu0 %v1040, 64
    %v1043 = vpop.permute.xlu0 %1042
    %vm1045 = vcmask 261127
    %1046 = vst.msk [vmem:[#allocation3] sm:$0x80] %vm1045, %v1043
    %v1047 = vld [vmem:[#allocation3] sm:$0xff]
    %v1048 = vld [vmem:[%s5] sm:$0xff]
    %v1049 = vld [vmem:[%s5 + $0x8] sm:$0xff]
    %v1050 = vld [vmem:[%s5 + $0x10] sm:$0xff]
    %v1051 = vld [vmem:[%s5 + $0x18] sm:$0xff]
    %v1052 = vld [vmem:[%s6] sm:$0x1]
    %v1054 = vlaneseq
    %v1055 = vshrl.u32 %v1054, 7
    %v1056 = vsub.s32 0, %v1055
    %v1057 = vrot.slane %v1052, %v1056
    %v1060 = vsel %vm85, %v1047, 0
    %1062 = vmatprep.subr.mxu0 0.0
    %1063 = vmatpush1.msra.mxu0 %v1048
    %1064 = vmatprep.subr.mxu0 0.0
    %1065 = vmatpush1.msra.mxu0 %v1049
    %1066 = vmatprep.subr.mxu0 0.0
    %1067 = vmatpush1.msra.mxu0 %v1050
    %1068 = vmatprep.subr.mxu0 0.0
    %1069 = vmatpush1.msra.mxu0 %v1051
    %1070 = vmatprep.subr.mxu0 0.0
    %1071 = vmatpush1.msra.mxu0 0.0
    %1072 = vmatprep.subr.mxu0 0.0
    %1073 = vmatpush1.msra.mxu0 0.0
    %1074 = vmatprep.subr.mxu0 0.0
    %1075 = vmatpush1.msra.mxu0 0.0
    %1076 = vmatprep.subr.mxu0 0.0
    %1077 = vmatpush1.msra.mxu0 0.0
    %1078 = vmatprep.subr.mxu0 0.0
    %1079 = vmatpush1.msra.mxu0 0.0
    %1080 = vmatprep.subr.mxu0 0.0
    %1081 = vmatpush1.msra.mxu0 0.0
    %1082 = vmatprep.subr.mxu0 0.0
    %1083 = vmatpush1.msra.mxu0 0.0
    %1084 = vmatprep.subr.mxu0 0.0
    %1085 = vmatpush1.msra.mxu0 0.0
    %1086 = vmatprep.subr.mxu0 0.0
    %1087 = vmatpush1.msra.mxu0 0.0
    %1088 = vmatprep.subr.mxu0 0.0
    %1089 = vmatpush1.msra.mxu0 0.0
    %1090 = vmatprep.subr.mxu0 0.0
    %1091 = vmatpush1.msra.mxu0 0.0
    %1092 = vmatprep.subr.mxu0 0.0
    %1093 = vmatpush1.msra.mxu0 0.0
    %1094 = vmatprep.subr.mxu0 0.0
    %1095 = vmatpush1.msra.mxu0 0.0
    %1096 = vmatprep.subr.mxu0 0.0
    %1097 = vmatpush1.msra.mxu0 0.0
    %1098 = vmatprep.subr.mxu0 0.0
    %1099 = vmatpush1.msra.mxu0 0.0
    %1100 = vmatprep.subr.mxu0 0.0
    %1101 = vmatpush1.msra.mxu0 0.0
    %1102 = vmatprep.subr.mxu0 0.0
    %1103 = vmatpush1.msra.mxu0 0.0
    %1104 = vmatprep.subr.mxu0 0.0
    %1105 = vmatpush1.msra.mxu0 0.0
    %1106 = vmatprep.subr.mxu0 0.0
    %1107 = vmatpush1.msra.mxu0 0.0
    %1108 = vmatprep.subr.mxu0 0.0
    %1109 = vmatpush1.msra.mxu0 0.0
    %1110 = vmatprep.subr.mxu0 0.0
    %1111 = vmatpush1.msra.mxu0 0.0
    %1112 = vmatprep.subr.mxu0 0.0
    %1113 = vmatpush1.msra.mxu0 0.0
    %1114 = vmatprep.subr.mxu0 0.0
    %1115 = vmatpush1.msra.mxu0 0.0
    %1116 = vmatprep.subr.mxu0 0.0
    %1117 = vmatpush1.msra.mxu0 0.0
    %1118 = vmatprep.subr.mxu0 0.0
    %1119 = vmatpush1.msra.mxu0 0.0
    %1120 = vmatprep.subr.mxu0 0.0
    %1121 = vmatpush1.msra.mxu0 0.0
    %1122 = vmatprep.subr.mxu0 0.0
    %1123 = vmatpush1.msra.mxu0 0.0
    %1124 = vmatprep.subr.mxu0 0.0
    %1125 = vmatpush1.msra.mxu0 0.0
    %1126 = vmatprep.mubr.f32.mxu0 0.0
    %1127 = vmatmul.mubr.f32.gmra.mrb[0].mxu0 %v1060
    %v1128 = vpop.f32.mrb[0].mxu0
    %v1129 = vadd.f32 %v1057, %v1128
    %v1130 = vpop.f32.mrb[0].mxu0
    %1131 = vdwg.mxu0
    %vm1132 = vcmask 64512
    %v1133 = vsel %vm1132, %v1129, -inf
    %1134 = vmax.xlane.f32.xlu0 %v1133
    %v1135 = vpop.xlane.xlu0 %1134
    %v1136 = vsub.f32 %v1129, %v1135
    %v1137 = vmul.f32 %v1136, 1.442695
    %v1138 = vpow.pop %v1137
    %v1139 = vsel %vm1132, %v1138, 0.0
    %1140 = vadd.xlane.f32.xlu0 %v1139
    %v1141 = vpop.xlane.xlu0 %1140
    %v1142 = vlog2.pop %v1141
    %v1143 = vmul.f32 %v1142, 0.6931472
    %v1144 = vsub.f32 %v1136, %v1143
    %1145 = vst.msk [vmem:[#allocation7] sm:$0xff] %vm1132, %v1144
    // Predicated region
    $region34: #{lstm_tagger_forward.1} parent=1 // pred_check
      _
    $region35: #{lstm_tagger_forward.1} parent=1 // pred_check_branch
      %1147 = sbr.rel (0) target = $region37
    $region36: #{lstm_tagger_forward.1} parent=1 // pred_region
      %s1149 = ssub.s32 128, 128
      %1150 = vsyncadd [#allocation5], %s1149
      %s1152 = sshll.u32 [#allocation7], 4
      %s1153 = int_to_ptr.vmem [resolvable:$true] %s1152
      %1155 = dma.vmem_to_hbm [thread:$0]  %s1153, 128, %s7, [#allocation5]
    $region37: #{lstm_tagger_forward.1} parent=1 // pred_fallthru
      _
    // Predicated region
    $region38: #{lstm_tagger_forward.1} parent=1 // pred_check
      _
    $region39: #{lstm_tagger_forward.1} parent=1 // pred_check_branch
      %1157 = sbr.rel (0) target = $region41
    $region40: #{lstm_tagger_forward.1} parent=1 // pred_region
      %1158 = dma.done [#allocation5], 128
    $region41: #{lstm_tagger_forward.1} parent=1 // pred_fallthru
      _
    %1159 = vsyncpa [#allocation5], 1
    %1160 = vsyncpa [#allocation6], 1

</llo_original>
